<compile_context>
chip_gen: v5e
topology: v5e:2x2
jax: 0.10.0
libtpu: 0.0.40
codegen_flags: <defaults>
</compile_context>

<pallas_src>
import functools

import jax
import jax.numpy as jnp
import numpy as np
from jax import lax
from jax.experimental import pallas as pl
from jax.experimental.pallas import tpu as pltpu


def init_forget_gate(size, a=0.001, b=0.1, lo=-9.0, hi=-4.323):
    x = jnp.log(jnp.expm1(jnp.linspace(a, b, size)))
    x = (x - x.min()) / (x.max() - x.min())
    x = x * abs(hi - lo) + lo
    return x.astype(jnp.float32)


def _erf(z):
    # Exact-GELU erf via Abramowitz & Stegun 7.1.26 (|err| < 1.5e-7 ~= f32 eps);
    # used because lax.erf has no guaranteed Mosaic lowering.
    az = jnp.abs(z)
    t = 1.0 / (1.0 + 0.3275911 * az)
    poly = t * (0.254829592 + t * (-0.284496736 + t * (1.421413741
             + t * (-1.453152027 + t * 1.061405429))))
    e = 1.0 - poly * jnp.exp(-az * az)
    return jnp.where(z >= 0.0, e, -e)


def selru_kernel(x_ref, w_in_ref, conv_w_ref, conv_b_ref,
                 w_gates_ref, b_gates_ref, A_ref, w_out_ref,
                 out_ref,
                 gskip_scr, xc_scr, sig_scr, bg_scr, cg_scr, y_scr, h_scr,
                 *, approx_sigmoid):
    Bblk, L, d = x_ref.shape
    K = conv_w_ref.shape[0]
    n = A_ref.shape[0]
    BL = Bblk * L
    mm_dtype = w_in_ref.dtype            # bf16 on the low-precision MXU path, else f32
    tc = next(t for t in (8, 4, 2, 1) if L % t == 0)   # timesteps unrolled per chunk

    x2 = x_ref[...].reshape(BL, d)

    # ---- fused input linear:  [skip | u] = x @ [w_skip | w_u]  (one MXU pass) ----
    su = jnp.dot(x2.astype(mm_dtype), w_in_ref[...],
                 preferred_element_type=jnp.float32)              # (BL, 2d) f32
    skip = su[:, :d]
    u2 = su[:, d:]

    # Exact (erf) GELU gate on skip; stash to VMEM so it is not live across the
    # serial scan (keeps the scan's register footprint at ~(Bblk, n, d)).
    gelu_skip = 0.5 * skip * (1.0 + _erf(skip * 0.7071067811865476))
    gskip_scr[...] = gelu_skip.reshape(Bblk, L, d)

    # ---- causal depthwise conv:  xc[l] = bias + sum_s w[K-1-s] * u[l-s] ----------
    # Implemented as K static sublane rolls (XLU slot, idle here) of the flattened
    # (BL, d) activations + a per-row time mask; conv bias is added exactly once.
    cw = conv_w_ref[...]                                          # (K, d)
    t_idx = lax.broadcasted_iota(jnp.int32, (Bblk, L, 1), 1).reshape(BL, 1)
    acc = u2 * cw[K - 1:K, :]                                     # s = 0 term
    for s in range(1, K):
        shifted = pltpu.roll(u2, shift=s, axis=0)                 # rows wrapped across
        shifted = jnp.where(t_idx >= s, shifted, 0.0)             # batches are masked
        acc = acc + shifted * cw[K - 1 - s:K - s, :]
    xc2 = acc + conv_b_ref[...]                                   # (BL, d) f32

    # ---- fused gate projections:  [b | c | lambda_pre] = xc @ [w_b | w_c | w_lam] --
    g = jnp.dot(xc2.astype(mm_dtype), w_gates_ref[...],
                preferred_element_type=jnp.float32) + b_gates_ref[...]   # (BL, 2n+d)
    bg = g[:, :n]
    cg = g[:, n:2 * n]
    lam_pre = g[:, 2 * n:]
    denom = 1.0 + jnp.exp(-lam_pre)
    if approx_sigmoid:
        sig = pl.reciprocal(denom, approx=True)     # EUP vrcp instead of VALU divide
    else:
        sig = 1.0 / denom

    xc_scr[...] = xc2.reshape(Bblk, L, d)
    sig_scr[...] = sig.reshape(Bblk, L, d)
    bg_scr[...] = bg.reshape(Bblk, L, n)
    cg_scr[...] = cg.reshape(Bblk, L, n)

    A = A_ref[...]                                                # (n, d)
    softplus_A = jnp.maximum(A, 0.0) + jnp.log(1.0 + jnp.exp(-jnp.abs(A)))
    a_neg = (-8.0 * softplus_A)[None, :, :]                       # (1, n, d), hoisted

    h_scr[...] = jnp.zeros_like(h_scr)

    # ---- serial scan: h_t = Lambda_t * h_{t-1} + bu_t, tc steps unrolled per chunk.
    # Lambda_t / bu_t are computed per timestep; only the (Bblk, n, d) state is live.
    @pl.loop(0, L // tc)
    def _(c):
        off = pl.multiple_of(c * tc, tc)
        sig_c = sig_scr[:, pl.ds(off, tc), :]                     # (Bblk, tc, d)
        xc_c = xc_scr[:, pl.ds(off, tc), :]                       # (Bblk, tc, d)
        bg_c = bg_scr[:, pl.ds(off, tc), :]                       # (Bblk, tc, n)
        cg_c = cg_scr[:, pl.ds(off, tc), :]                       # (Bblk, tc, n)
        h = h_scr[...]                                            # (Bblk, n, d)
        ys = []
        for t in range(tc):
            lam_t = jnp.exp(sig_c[:, t, :][:, None, :] * a_neg)          # (Bblk, n, d)
            bu_t = bg_c[:, t, :][:, :, None] * xc_c[:, t, :][:, None, :]
            bu_t = jnp.sqrt(1.0 - lam_t * lam_t + 1e-6) * bu_t
            h = lam_t * h + bu_t
            ys.append(jnp.sum(cg_c[:, t, :][:, :, None] * h, axis=1))    # (Bblk, d)
        h_scr[...] = h
        y_scr[:, pl.ds(off, tc), :] = jnp.stack(ys, axis=1)       # aligned tc-row slab

    # ---- GELU gate + output linear ----
    gated = (gskip_scr[...] * y_scr[...]).reshape(BL, d)
    out_ref[...] = jnp.dot(gated.astype(mm_dtype), w_out_ref[...],
                           preferred_element_type=jnp.float32
                           ).reshape(Bblk, L, d).astype(out_ref.dtype)


def selru_forward(x, params, *, mxu_bf16=False, approx_sigmoid=True,
                  batch_block=None, vmem_budget_bytes=24 * 2**20):
    B, L, d = x.shape
    n = params['A'].shape[0]

    # Host-side weight fusion: one MXU pass for [skip|u], one for [b|c|lambda_pre].
    w_in = jnp.concatenate([params['w_skip'], params['w_u']], axis=1)             # (d, 2d)
    w_gates = jnp.concatenate([params['w_b'], params['w_c'], params['w_lam']], axis=1)
    b_gates = jnp.concatenate([params['bias_b'], params['bias_c'], params['b_lam']], axis=1)
    w_out = params['w_out']
    if mxu_bf16:
        # bf16 MXU operands (peak rate on v6e/v7x), f32 accumulate. Elementwise/EUP
        # math stays f32 (v5e has no bf16 VPU/EUP, and it protects the recurrence).
        w_in = w_in.astype(jnp.bfloat16)
        w_gates = w_gates.astype(jnp.bfloat16)
        w_out = w_out.astype(jnp.bfloat16)

    # Per-grid-step VMEM working set (f32): in/out blocks (double-buffered) +
    # scratches + live matmul intermediates.  Budgeted against v7x (64 MiB phys).
    def step_bytes(bblk):
        blocks = 2 * 2 * bblk * L * d * 4
        scratch = bblk * (L * (4 * d + 2 * n) + n * d) * 4
        live = bblk * L * (3 * d + 2 * n) * 4
        return blocks + scratch + live

    # Multiple batch rows per grid step: fills vregs, amortizes the ~0.35us grid
    # step overhead and the MXU weight pushes.
    if batch_block is None:
        batch_block = 1
        for cand in range(1, min(B, 8) + 1):
            if B % cand == 0 and step_bytes(cand) <= vmem_budget_bytes:
                batch_block = cand
    Bblk = batch_block
    assert B % Bblk == 0, "batch_block must divide the batch size"

    ordered = [w_in, params['conv_w'], params['conv_b'],
               w_gates, b_gates, params['A'], w_out]

    def param_spec(p):
        r = p.ndim
        return pl.BlockSpec(p.shape, lambda i, _r=r: (0,) * _r)

    grid_spec = pltpu.PrefetchScalarGridSpec(
        num_scalar_prefetch=0,
        grid=(B // Bblk,),
        in_specs=[pl.BlockSpec((Bblk, L, d), lambda i: (i, 0, 0))]
                 + [param_spec(p) for p in ordered],
        out_specs=pl.BlockSpec((Bblk, L, d), lambda i: (i, 0, 0)),
        scratch_shapes=[
            pltpu.VMEM((Bblk, L, d), jnp.float32),   # gelu(skip)
            pltpu.VMEM((Bblk, L, d), jnp.float32),   # xc (conv output)
            pltpu.VMEM((Bblk, L, d), jnp.float32),   # sigmoid(lambda_pre)
            pltpu.VMEM((Bblk, L, n), jnp.float32),   # b gate
            pltpu.VMEM((Bblk, L, n), jnp.float32),   # c gate
            pltpu.VMEM((Bblk, L, d), jnp.float32),   # y (scan output)
            pltpu.VMEM((Bblk, n, d), jnp.float32),   # h (scan state, persists across chunks)
        ],
    )
    # TODO(synk): for L far beyond the VMEM budget, additionally chunk L across grid
    # steps (carrying h in scratch over an "arbitrary" axis); not needed at these sizes.

    param_bytes = sum(int(np.prod(p.shape)) * p.dtype.itemsize for p in ordered)
    vmem_limit = int(min(max(step_bytes(Bblk) + 2 * param_bytes + (2 << 20), 4 << 20),
                         48 << 20))

    mm_flops = 2 * B * L * d * (2 * d + (2 * n + d) + d)
    scan_flops = 10 * B * L * n * d
    cost = pl.CostEstimate(
        flops=int(mm_flops + scan_flops),
        transcendentals=int(B * L * (n * d + 3 * d)),     # exp(Lambda), sigmoid, erf
        bytes_accessed=int(8 * B * L * d + param_bytes),
    )

    kernel = functools.partial(selru_kernel, approx_sigmoid=approx_sigmoid)
    return pl.pallas_call(
        kernel,
        out_shape=jax.ShapeDtypeStruct((B, L, d), jnp.float32),
        grid_spec=grid_spec,
        compiler_params=pltpu.CompilerParams(
            dimension_semantics=("parallel",),   # independent batch blocks -> megacore on v7x
            vmem_limit_bytes=vmem_limit),
        cost_estimate=cost,
    )(x, *ordered)


def selru_ref(x, p):
    """Pure-JAX reference mirroring the PyTorch forward."""
    B, L, d = x.shape
    K = p['conv_w'].shape[0]
    n = p['A'].shape[0]
    skip = x @ p['w_skip']
    u = x @ p['w_u']
    upad = jnp.pad(u, ((0, 0), (K - 1, 0), (0, 0)))
    xc = jnp.zeros((B, L, d), jnp.float32) + p['conv_b'][0]
    for k in range(K):
        xc = xc + upad[:, k:k + L, :] * p['conv_w'][k]
    bg = xc @ p['w_b'] + p['bias_b'][0]
    cg = xc @ p['w_c'] + p['bias_c'][0]
    lam = jax.nn.sigmoid(xc @ p['w_lam'] + p['b_lam'][0])
    a_neg = -8.0 * jax.nn.softplus(p['A'])
    Lambda = jnp.exp(jnp.einsum('bld,nd->blnd', lam, a_neg))
    bu = jnp.einsum('bln,bld->blnd', bg, xc)
    bu = jnp.sqrt(1.0 - Lambda ** 2 + 1e-6) * bu

    def step(h, inp):
        lam_t, bu_t = inp
        h = lam_t * h + bu_t
        return h, h
    _, hs = jax.lax.scan(step, jnp.zeros((B, n, d), jnp.float32),
                         (jnp.swapaxes(Lambda, 0, 1), jnp.swapaxes(bu, 0, 1)))
    h = jnp.swapaxes(hs, 0, 1)                                   # (B, L, n, d)
    y = jnp.einsum('bln,blnd->bld', cg, h)
    return (jax.nn.gelu(skip, approximate=False) * y) @ p['w_out']


if __name__ == "__main__":
    B, L, d, n, K = 2, 8, 32, 8, 4
    key = jax.random.PRNGKey(0)
    ks = jax.random.split(key, 12)
    # Deterministic synthetic parameters (shapes follow SELRU.__init__, with the two
    # fused Linears pre-split into their chunk halves and pre-transposed for x @ w).
    p = {
        'w_skip': jax.random.normal(ks[0], (d, d), jnp.float32) * d ** -0.5,
        'w_u':    jax.random.normal(ks[1], (d, d), jnp.float32) * d ** -0.5,
        'conv_w': jax.random.normal(ks[2], (K, d), jnp.float32) * (1.0 / K) ** 0.5,
        'conv_b': jax.random.normal(ks[3], (1, d), jnp.float32) * 0.1,
        'w_b':    jax.random.normal(ks[4], (d, n), jnp.float32) * n ** -0.5,
        'bias_b': jax.random.normal(ks[5], (1, n), jnp.float32) * 0.1,
        'w_c':    jax.random.normal(ks[6], (d, n), jnp.float32) * n ** -0.5,
        'bias_c': jax.random.normal(ks[7], (1, n), jnp.float32) * 0.1,
        'w_lam':  jax.random.normal(ks[8], (d, d), jnp.float32) * d ** -0.5,
        'b_lam':  jax.random.normal(ks[9], (1, d), jnp.float32) * 0.1,
        'A':      jnp.tile(init_forget_gate(d)[None, :], (n, 1)),
        'w_out':  jax.random.normal(ks[10], (d, d), jnp.float32) * d ** -0.5,
    }
    x = jax.random.normal(ks[11], (B, L, d), jnp.float32)

    ref = jax.block_until_ready(selru_ref(x, p))

    # 1) Reference-precision config: f32 MXU, exact sigmoid -> tight check of the
    #    restructured kernel (roll-based conv, fused matmuls, chunked pl.loop scan).
    out = jax.block_until_ready(
        selru_forward(x, p, mxu_bf16=False, approx_sigmoid=False))
    np.testing.assert_allclose(np.asarray(out), np.asarray(ref), atol=5e-4, rtol=1e-3)

    # 2) Performance config (what you'd run on v6e/v7x): bf16 MXU operands with f32
    #    accumulate + approx-reciprocal sigmoid -> looser, bf16-level tolerance.
    out_fast = jax.block_until_ready(
        selru_forward(x, p, mxu_bf16=True, approx_sigmoid=True))
    np.testing.assert_allclose(np.asarray(out_fast), np.asarray(ref), atol=1e-1, rtol=5e-2)

    print("KERNEL_OK")
</pallas_src>

<mosaic_0001>
module attributes {stable_mosaic.version = 11 : i64} {
  func.func @selru_kernel(%arg0: i32, %arg1: memref<2x8x32xf32, #tpu.memory_space<vmem>>, %arg2: memref<32x64xf32, #tpu.memory_space<vmem>>, %arg3: memref<4x32xf32, #tpu.memory_space<vmem>>, %arg4: memref<1x32xf32, #tpu.memory_space<vmem>>, %arg5: memref<32x48xf32, #tpu.memory_space<vmem>>, %arg6: memref<1x48xf32, #tpu.memory_space<vmem>>, %arg7: memref<8x32xf32, #tpu.memory_space<vmem>>, %arg8: memref<32x32xf32, #tpu.memory_space<vmem>>, %arg9: memref<2x8x32xf32, #tpu.memory_space<vmem>>, %arg10: memref<2x8x32xf32, #tpu.memory_space<vmem>>, %arg11: memref<2x8x32xf32, #tpu.memory_space<vmem>>, %arg12: memref<2x8x32xf32, #tpu.memory_space<vmem>>, %arg13: memref<2x8x8xf32, #tpu.memory_space<vmem>>, %arg14: memref<2x8x8xf32, #tpu.memory_space<vmem>>, %arg15: memref<2x8x32xf32, #tpu.memory_space<vmem>>, %arg16: memref<2x8x32xf32, #tpu.memory_space<vmem>>) attributes {dimension_semantics = [#tpu.dimension_semantics<parallel>], iteration_bounds = array<i64: 1>, scalar_prefetch = 0 : i64, scratch_operands = 7 : i64, tpu.core_type = #tpu.core_type<tc>, window_params = [{transform_indices = @transform_0, window_bounds = array<i64: 2, 8, 32>}, {pipeline_mode = #tpu.pipeline_mode<synchronous>, transform_indices = @transform_1, window_bounds = array<i64: 32, 64>}, {pipeline_mode = #tpu.pipeline_mode<synchronous>, transform_indices = @transform_2, window_bounds = array<i64: 4, 32>}, {pipeline_mode = #tpu.pipeline_mode<synchronous>, transform_indices = @transform_3, window_bounds = array<i64: 1, 32>}, {pipeline_mode = #tpu.pipeline_mode<synchronous>, transform_indices = @transform_4, window_bounds = array<i64: 32, 48>}, {pipeline_mode = #tpu.pipeline_mode<synchronous>, transform_indices = @transform_5, window_bounds = array<i64: 1, 48>}, {pipeline_mode = #tpu.pipeline_mode<synchronous>, transform_indices = @transform_6, window_bounds = array<i64: 8, 32>}, {pipeline_mode = #tpu.pipeline_mode<synchronous>, transform_indices = @transform_7, window_bounds = array<i64: 32, 32>}, {transform_indices = @transform_8, window_bounds = array<i64: 2, 8, 32>}]} {
    %c0 = arith.constant 0 : index
    %c0_0 = arith.constant 0 : index
    %c0_1 = arith.constant 0 : index
    %0 = vector.load %arg1[%c0, %c0_0, %c0_1] : memref<2x8x32xf32, #tpu.memory_space<vmem>>, vector<2x8x32xf32>
    %1 = vector.shape_cast %0 : vector<2x8x32xf32> to vector<16x32xf32>
    %c0_2 = arith.constant 0 : index
    %c0_3 = arith.constant 0 : index
    %2 = vector.load %arg2[%c0_2, %c0_3] : memref<32x64xf32, #tpu.memory_space<vmem>>, vector<32x64xf32>
    %cst = arith.constant dense<0.000000e+00> : vector<16x64xf32>
    %3 = tpu.matmul %1, %2, %cst {dimension_numbers = #tpu.dot_dimension_numbers<[1], [0], [0], [1], [0, 0, 1, 1], [], []>} : vector<16x32xf32>, vector<32x64xf32>, vector<16x64xf32> -> vector<16x64xf32>
    %4 = vector.extract_strided_slice %3 {offsets = [0, 0], sizes = [16, 32], strides = [1, 1]} : vector<16x64xf32> to vector<16x32xf32>
    %5 = vector.extract_strided_slice %3 {offsets = [0, 32], sizes = [16, 32], strides = [1, 1]} : vector<16x64xf32> to vector<16x32xf32>
    %cst_4 = arith.constant 5.000000e-01 : f32
    %6 = vector.broadcast %cst_4 : f32 to vector<16x32xf32>
    %7 = arith.mulf %6, %4 : vector<16x32xf32>
    %cst_5 = arith.constant 0.707106769 : f32
    %8 = vector.broadcast %cst_5 : f32 to vector<16x32xf32>
    %9 = arith.mulf %4, %8 : vector<16x32xf32>
    %10 = math.absf %9 : vector<16x32xf32>
    %cst_6 = arith.constant 0.327591091 : f32
    %11 = vector.broadcast %cst_6 : f32 to vector<16x32xf32>
    %12 = arith.mulf %11, %10 : vector<16x32xf32>
    %cst_7 = arith.constant 1.000000e+00 : f32
    %13 = vector.broadcast %cst_7 : f32 to vector<16x32xf32>
    %14 = arith.addf %13, %12 : vector<16x32xf32>
    %cst_8 = arith.constant 1.000000e+00 : f32
    %15 = vector.broadcast %cst_8 : f32 to vector<16x32xf32>
    %16 = arith.divf %15, %14 : vector<16x32xf32>
    %cst_9 = arith.constant 1.06140542 : f32
    %17 = vector.broadcast %cst_9 : f32 to vector<16x32xf32>
    %18 = arith.mulf %16, %17 : vector<16x32xf32>
    %cst_10 = arith.constant -1.45315206 : f32
    %19 = vector.broadcast %cst_10 : f32 to vector<16x32xf32>
    %20 = arith.addf %19, %18 : vector<16x32xf32>
    %21 = arith.mulf %16, %20 : vector<16x32xf32>
    %cst_11 = arith.constant 1.42141378 : f32
    %22 = vector.broadcast %cst_11 : f32 to vector<16x32xf32>
    %23 = arith.addf %22, %21 : vector<16x32xf32>
    %24 = arith.mulf %16, %23 : vector<16x32xf32>
    %cst_12 = arith.constant -0.284496725 : f32
    %25 = vector.broadcast %cst_12 : f32 to vector<16x32xf32>
    %26 = arith.addf %25, %24 : vector<16x32xf32>
    %27 = arith.mulf %16, %26 : vector<16x32xf32>
    %cst_13 = arith.constant 0.254829586 : f32
    %28 = vector.broadcast %cst_13 : f32 to vector<16x32xf32>
    %29 = arith.addf %28, %27 : vector<16x32xf32>
    %30 = arith.mulf %16, %29 : vector<16x32xf32>
    %cst_14 = arith.constant 0.000000e+00 : f32
    %31 = vector.broadcast %cst_14 : f32 to vector<16x32xf32>
    %32 = arith.subf %31, %10 : vector<16x32xf32>
    %33 = arith.mulf %32, %10 : vector<16x32xf32>
    %34 = math.exp %33 : vector<16x32xf32>
    %35 = arith.mulf %30, %34 : vector<16x32xf32>
    %cst_15 = arith.constant 1.000000e+00 : f32
    %36 = vector.broadcast %cst_15 : f32 to vector<16x32xf32>
    %37 = arith.subf %36, %35 : vector<16x32xf32>
    %cst_16 = arith.constant 0.000000e+00 : f32
    %38 = vector.broadcast %cst_16 : f32 to vector<16x32xf32>
    %39 = arith.cmpf oge, %9, %38 : vector<16x32xf32>
    %cst_17 = arith.constant 0.000000e+00 : f32
    %40 = vector.broadcast %cst_17 : f32 to vector<16x32xf32>
    %41 = arith.subf %40, %37 : vector<16x32xf32>
    %42 = arith.select %39, %37, %41 : vector<16x32xi1>, vector<16x32xf32>
    %cst_18 = arith.constant 1.000000e+00 : f32
    %43 = vector.broadcast %cst_18 : f32 to vector<16x32xf32>
    %44 = arith.addf %43, %42 : vector<16x32xf32>
    %45 = arith.mulf %7, %44 : vector<16x32xf32>
    %46 = vector.shape_cast %45 : vector<16x32xf32> to vector<2x8x32xf32>
    %c0_19 = arith.constant 0 : index
    %c0_20 = arith.constant 0 : index
    %c0_21 = arith.constant 0 : index
    %47 = vector.load %arg10[%c0_19, %c0_20, %c0_21] : memref<2x8x32xf32, #tpu.memory_space<vmem>>, vector<2x8x32xf32>
    tpu.vector_store %arg10[%c0_19, %c0_20, %c0_21], %46 {strides = array<i32>} : memref<2x8x32xf32, #tpu.memory_space<vmem>>, vector<2x8x32xf32>,
    %c0_22 = arith.constant 0 : index
    %c0_23 = arith.constant 0 : index
    %48 = vector.load %arg3[%c0_22, %c0_23] : memref<4x32xf32, #tpu.memory_space<vmem>>, vector<4x32xf32>
    %49 = tpu.iota {dimensions = array<i32: 1>} : vector<2x8x1xi32>
    %50 = vector.shape_cast %49 : vector<2x8x1xi32> to vector<16x1xi32>
    %51 = vector.extract_strided_slice %48 {offsets = [3, 0], sizes = [1, 32], strides = [1, 1]} : vector<4x32xf32> to vector<1x32xf32>
    %52 = vector.broadcast %51 : vector<1x32xf32> to vector<16x32xf32>
    %53 = arith.mulf %5, %52 : vector<16x32xf32>
    %c1_i32 = arith.constant 1 : i32
    %54 = tpu.dynamic_rotate %5 by %c1_i32 dim 0 : vector<16x32xf32>, i32 -> vector<16x32xf32>
    %c1_i32_24 = arith.constant 1 : i32
    %55 = vector.broadcast %c1_i32_24 : i32 to vector<16x1xi32>
    %56 = arith.cmpi sge, %50, %55 : vector<16x1xi32>
    %cst_25 = arith.constant 0.000000e+00 : f32
    %57 = vector.shape_cast %56 : vector<16x1xi1> to vector<16x1xi1>
    %58 = vector.broadcast %57 : vector<16x1xi1> to vector<16x32xi1>
    %59 = vector.broadcast %cst_25 : f32 to vector<16x32xf32>
    %60 = arith.select %58, %54, %59 : vector<16x32xi1>, vector<16x32xf32>
    %61 = vector.extract_strided_slice %48 {offsets = [2, 0], sizes = [1, 32], strides = [1, 1]} : vector<4x32xf32> to vector<1x32xf32>
    %62 = vector.broadcast %61 : vector<1x32xf32> to vector<16x32xf32>
    %63 = arith.mulf %60, %62 : vector<16x32xf32>
    %64 = arith.addf %53, %63 : vector<16x32xf32>
    %c2_i32 = arith.constant 2 : i32
    %65 = tpu.dynamic_rotate %5 by %c2_i32 dim 0 : vector<16x32xf32>, i32 -> vector<16x32xf32>
    %c2_i32_26 = arith.constant 2 : i32
    %66 = vector.broadcast %c2_i32_26 : i32 to vector<16x1xi32>
    %67 = arith.cmpi sge, %50, %66 : vector<16x1xi32>
    %cst_27 = arith.constant 0.000000e+00 : f32
    %68 = vector.shape_cast %67 : vector<16x1xi1> to vector<16x1xi1>
    %69 = vector.broadcast %68 : vector<16x1xi1> to vector<16x32xi1>
    %70 = vector.broadcast %cst_27 : f32 to vector<16x32xf32>
    %71 = arith.select %69, %65, %70 : vector<16x32xi1>, vector<16x32xf32>
    %72 = vector.extract_strided_slice %48 {offsets = [1, 0], sizes = [1, 32], strides = [1, 1]} : vector<4x32xf32> to vector<1x32xf32>
    %73 = vector.broadcast %72 : vector<1x32xf32> to vector<16x32xf32>
    %74 = arith.mulf %71, %73 : vector<16x32xf32>
    %75 = arith.addf %64, %74 : vector<16x32xf32>
    %c3_i32 = arith.constant 3 : i32
    %76 = tpu.dynamic_rotate %5 by %c3_i32 dim 0 : vector<16x32xf32>, i32 -> vector<16x32xf32>
    %c3_i32_28 = arith.constant 3 : i32
    %77 = vector.broadcast %c3_i32_28 : i32 to vector<16x1xi32>
    %78 = arith.cmpi sge, %50, %77 : vector<16x1xi32>
    %cst_29 = arith.constant 0.000000e+00 : f32
    %79 = vector.shape_cast %78 : vector<16x1xi1> to vector<16x1xi1>
    %80 = vector.broadcast %79 : vector<16x1xi1> to vector<16x32xi1>
    %81 = vector.broadcast %cst_29 : f32 to vector<16x32xf32>
    %82 = arith.select %80, %76, %81 : vector<16x32xi1>, vector<16x32xf32>
    %83 = vector.extract_strided_slice %48 {offsets = [0, 0], sizes = [1, 32], strides = [1, 1]} : vector<4x32xf32> to vector<1x32xf32>
    %84 = vector.broadcast %83 : vector<1x32xf32> to vector<16x32xf32>
    %85 = arith.mulf %82, %84 : vector<16x32xf32>
    %86 = arith.addf %75, %85 : vector<16x32xf32>
    %c0_30 = arith.constant 0 : index
    %c0_31 = arith.constant 0 : index
    %87 = vector.load %arg4[%c0_30, %c0_31] : memref<1x32xf32, #tpu.memory_space<vmem>>, vector<1x32xf32>
    %88 = vector.broadcast %87 : vector<1x32xf32> to vector<16x32xf32>
    %89 = arith.addf %86, %88 : vector<16x32xf32>
    %c0_32 = arith.constant 0 : index
    %c0_33 = arith.constant 0 : index
    %90 = vector.load %arg5[%c0_32, %c0_33] : memref<32x48xf32, #tpu.memory_space<vmem>>, vector<32x48xf32>
    %cst_34 = arith.constant dense<0.000000e+00> : vector<16x48xf32>
    %91 = tpu.matmul %89, %90, %cst_34 {dimension_numbers = #tpu.dot_dimension_numbers<[1], [0], [0], [1], [0, 0, 1, 1], [], []>} : vector<16x32xf32>, vector<32x48xf32>, vector<16x48xf32> -> vector<16x48xf32>
    %c0_35 = arith.constant 0 : index
    %c0_36 = arith.constant 0 : index
    %92 = vector.load %arg6[%c0_35, %c0_36] : memref<1x48xf32, #tpu.memory_space<vmem>>, vector<1x48xf32>
    %93 = vector.broadcast %92 : vector<1x48xf32> to vector<16x48xf32>
    %94 = arith.addf %91, %93 : vector<16x48xf32>
    %95 = vector.extract_strided_slice %94 {offsets = [0, 0], sizes = [16, 8], strides = [1, 1]} : vector<16x48xf32> to vector<16x8xf32>
    %96 = vector.extract_strided_slice %94 {offsets = [0, 8], sizes = [16, 8], strides = [1, 1]} : vector<16x48xf32> to vector<16x8xf32>
    %97 = vector.extract_strided_slice %94 {offsets = [0, 16], sizes = [16, 32], strides = [1, 1]} : vector<16x48xf32> to vector<16x32xf32>
    %cst_37 = arith.constant 0.000000e+00 : f32
    %98 = vector.broadcast %cst_37 : f32 to vector<16x32xf32>
    %99 = arith.subf %98, %97 : vector<16x32xf32>
    %100 = math.exp %99 : vector<16x32xf32>
    %cst_38 = arith.constant 1.000000e+00 : f32
    %101 = vector.broadcast %cst_38 : f32 to vector<16x32xf32>
    %102 = arith.addf %101, %100 : vector<16x32xf32>
    %cst_39 = arith.constant 1.000000e+00 : f32
    %103 = vector.broadcast %cst_39 : f32 to vector<16x32xf32>
    %104 = arith.divf %103, %102 : vector<16x32xf32>
    %105 = vector.shape_cast %89 : vector<16x32xf32> to vector<2x8x32xf32>
    %c0_40 = arith.constant 0 : index
    %c0_41 = arith.constant 0 : index
    %c0_42 = arith.constant 0 : index
    %106 = vector.load %arg11[%c0_40, %c0_41, %c0_42] : memref<2x8x32xf32, #tpu.memory_space<vmem>>, vector<2x8x32xf32>
    tpu.vector_store %arg11[%c0_40, %c0_41, %c0_42], %105 {strides = array<i32>} : memref<2x8x32xf32, #tpu.memory_space<vmem>>, vector<2x8x32xf32>,
    %107 = vector.shape_cast %104 : vector<16x32xf32> to vector<2x8x32xf32>
    %c0_43 = arith.constant 0 : index
    %c0_44 = arith.constant 0 : index
    %c0_45 = arith.constant 0 : index
    %108 = vector.load %arg12[%c0_43, %c0_44, %c0_45] : memref<2x8x32xf32, #tpu.memory_space<vmem>>, vector<2x8x32xf32>
    tpu.vector_store %arg12[%c0_43, %c0_44, %c0_45], %107 {strides = array<i32>} : memref<2x8x32xf32, #tpu.memory_space<vmem>>, vector<2x8x32xf32>,
    %109 = vector.shape_cast %95 : vector<16x8xf32> to vector<2x8x8xf32>
    %c0_46 = arith.constant 0 : index
    %c0_47 = arith.constant 0 : index
    %c0_48 = arith.constant 0 : index
    %110 = vector.load %arg13[%c0_46, %c0_47, %c0_48] : memref<2x8x8xf32, #tpu.memory_space<vmem>>, vector<2x8x8xf32>
    tpu.vector_store %arg13[%c0_46, %c0_47, %c0_48], %109 {strides = array<i32>} : memref<2x8x8xf32, #tpu.memory_space<vmem>>, vector<2x8x8xf32>,
    %111 = vector.shape_cast %96 : vector<16x8xf32> to vector<2x8x8xf32>
    %c0_49 = arith.constant 0 : index
    %c0_50 = arith.constant 0 : index
    %c0_51 = arith.constant 0 : index
    %112 = vector.load %arg14[%c0_49, %c0_50, %c0_51] : memref<2x8x8xf32, #tpu.memory_space<vmem>>, vector<2x8x8xf32>
    tpu.vector_store %arg14[%c0_49, %c0_50, %c0_51], %111 {strides = array<i32>} : memref<2x8x8xf32, #tpu.memory_space<vmem>>, vector<2x8x8xf32>,
    %c0_52 = arith.constant 0 : index
    %c0_53 = arith.constant 0 : index
    %113 = vector.load %arg7[%c0_52, %c0_53] : memref<8x32xf32, #tpu.memory_space<vmem>>, vector<8x32xf32>
    %cst_54 = arith.constant 0.000000e+00 : f32
    %114 = vector.broadcast %cst_54 : f32 to vector<8x32xf32>
    %115 = arith.maximumf %113, %114 : vector<8x32xf32>
    %116 = math.absf %113 : vector<8x32xf32>
    %cst_55 = arith.constant 0.000000e+00 : f32
    %117 = vector.broadcast %cst_55 : f32 to vector<8x32xf32>
    %118 = arith.subf %117, %116 : vector<8x32xf32>
    %119 = math.exp %118 : vector<8x32xf32>
    %cst_56 = arith.constant 1.000000e+00 : f32
    %120 = vector.broadcast %cst_56 : f32 to vector<8x32xf32>
    %121 = arith.addf %120, %119 : vector<8x32xf32>
    %122 = math.log %121 : vector<8x32xf32>
    %123 = arith.addf %115, %122 : vector<8x32xf32>
    %cst_57 = arith.constant -8.000000e+00 : f32
    %124 = vector.broadcast %cst_57 : f32 to vector<8x32xf32>
    %125 = arith.mulf %124, %123 : vector<8x32xf32>
    %126 = vector.shape_cast %125 : vector<8x32xf32> to vector<1x8x32xf32>
    %cst_58 = arith.constant 0.000000e+00 : f32
    %127 = vector.broadcast %cst_58 : f32 to vector<2x8x32xf32>
    %c0_59 = arith.constant 0 : index
    %c0_60 = arith.constant 0 : index
    %c0_61 = arith.constant 0 : index
    %128 = vector.load %arg16[%c0_59, %c0_60, %c0_61] : memref<2x8x32xf32, #tpu.memory_space<vmem>>, vector<2x8x32xf32>
    tpu.vector_store %arg16[%c0_59, %c0_60, %c0_61], %127 {strides = array<i32>} : memref<2x8x32xf32, #tpu.memory_space<vmem>>, vector<2x8x32xf32>,
    %c0_i32 = arith.constant 0 : i32
    %c1_i32_62 = arith.constant 1 : i32
    %129 = arith.muli %c0_i32, %c1_i32_62 : i32
    %c0_i32_63 = arith.constant 0 : i32
    %130 = arith.addi %c0_i32_63, %129 : i32
    %c8_i32 = arith.constant 8 : i32
    %131 = arith.muli %130, %c8_i32 : i32
    %132 = tpu.assume_multiple %131, 8 : i32
    %c0_64 = arith.constant 0 : index
    %133 = arith.index_cast %132 : i32 to index
    %c0_65 = arith.constant 0 : index
    %134 = vector.load %arg12[%c0_64, %133, %c0_65] : memref<2x8x32xf32, #tpu.memory_space<vmem>>, vector<2x8x32xf32>
    %c0_66 = arith.constant 0 : index
    %135 = arith.index_cast %132 : i32 to index
    %c0_67 = arith.constant 0 : index
    %136 = vector.load %arg11[%c0_66, %135, %c0_67] : memref<2x8x32xf32, #tpu.memory_space<vmem>>, vector<2x8x32xf32>
    %c0_68 = arith.constant 0 : index
    %137 = arith.index_cast %132 : i32 to index
    %c0_69 = arith.constant 0 : index
    %138 = vector.load %arg13[%c0_68, %137, %c0_69] : memref<2x8x8xf32, #tpu.memory_space<vmem>>, vector<2x8x8xf32>
    %c0_70 = arith.constant 0 : index
    %139 = arith.index_cast %132 : i32 to index
    %c0_71 = arith.constant 0 : index
    %140 = vector.load %arg14[%c0_70, %139, %c0_71] : memref<2x8x8xf32, #tpu.memory_space<vmem>>, vector<2x8x8xf32>
    %c0_72 = arith.constant 0 : index
    %c0_73 = arith.constant 0 : index
    %c0_74 = arith.constant 0 : index
    %141 = vector.load %arg16[%c0_72, %c0_73, %c0_74] : memref<2x8x32xf32, #tpu.memory_space<vmem>>, vector<2x8x32xf32>
    %142 = vector.extract_strided_slice %134 {offsets = [0, 0, 0], sizes = [2, 1, 32], strides = [1, 1, 1]} : vector<2x8x32xf32> to vector<2x1x32xf32>
    %143 = vector.shape_cast %142 : vector<2x1x32xf32> to vector<2x32xf32>
    %144 = vector.shape_cast %143 : vector<2x32xf32> to vector<2x1x32xf32>
    %145 = vector.broadcast %144 : vector<2x1x32xf32> to vector<2x8x32xf32>
    %146 = vector.broadcast %126 : vector<1x8x32xf32> to vector<2x8x32xf32>
    %147 = arith.mulf %145, %146 : vector<2x8x32xf32>
    %148 = math.exp %147 : vector<2x8x32xf32>
    %149 = vector.extract_strided_slice %138 {offsets = [0, 0, 0], sizes = [2, 1, 8], strides = [1, 1, 1]} : vector<2x8x8xf32> to vector<2x1x8xf32>
    %150 = vector.shape_cast %149 : vector<2x1x8xf32> to vector<2x8xf32>
    %151 = vector.shape_cast %150 : vector<2x8xf32> to vector<2x8x1xf32>
    %152 = vector.extract_strided_slice %136 {offsets = [0, 0, 0], sizes = [2, 1, 32], strides = [1, 1, 1]} : vector<2x8x32xf32> to vector<2x1x32xf32>
    %153 = vector.shape_cast %152 : vector<2x1x32xf32> to vector<2x32xf32>
    %154 = vector.shape_cast %153 : vector<2x32xf32> to vector<2x1x32xf32>
    %155 = vector.broadcast %151 : vector<2x8x1xf32> to vector<2x8x32xf32>
    %156 = vector.broadcast %154 : vector<2x1x32xf32> to vector<2x8x32xf32>
    %157 = arith.mulf %155, %156 : vector<2x8x32xf32>
    %158 = arith.mulf %148, %148 : vector<2x8x32xf32>
    %cst_75 = arith.constant 1.000000e+00 : f32
    %159 = vector.broadcast %cst_75 : f32 to vector<2x8x32xf32>
    %160 = arith.subf %159, %158 : vector<2x8x32xf32>
    %cst_76 = arith.constant 9.99999997E-7 : f32
    %161 = vector.broadcast %cst_76 : f32 to vector<2x8x32xf32>
    %162 = arith.addf %160, %161 : vector<2x8x32xf32>
    %163 = math.sqrt %162 : vector<2x8x32xf32>
    %164 = arith.mulf %163, %157 : vector<2x8x32xf32>
    %165 = arith.mulf %148, %141 : vector<2x8x32xf32>
    %166 = arith.addf %165, %164 : vector<2x8x32xf32>
    %167 = vector.extract_strided_slice %140 {offsets = [0, 0, 0], sizes = [2, 1, 8], strides = [1, 1, 1]} : vector<2x8x8xf32> to vector<2x1x8xf32>
    %168 = vector.shape_cast %167 : vector<2x1x8xf32> to vector<2x8xf32>
    %169 = vector.shape_cast %168 : vector<2x8xf32> to vector<2x8x1xf32>
    %170 = vector.broadcast %169 : vector<2x8x1xf32> to vector<2x8x32xf32>
    %171 = arith.mulf %170, %166 : vector<2x8x32xf32>
    %cst_77 = arith.constant dense<0.000000e+00> : vector<2x32xf32>
    %172 = vector.multi_reduction <add>, %171, %cst_77 [1] : vector<2x8x32xf32> to vector<2x32xf32>
    %173 = vector.extract_strided_slice %134 {offsets = [0, 1, 0], sizes = [2, 1, 32], strides = [1, 1, 1]} : vector<2x8x32xf32> to vector<2x1x32xf32>
    %174 = vector.shape_cast %173 : vector<2x1x32xf32> to vector<2x32xf32>
    %175 = vector.shape_cast %174 : vector<2x32xf32> to vector<2x1x32xf32>
    %176 = vector.broadcast %175 : vector<2x1x32xf32> to vector<2x8x32xf32>
    %177 = vector.broadcast %126 : vector<1x8x32xf32> to vector<2x8x32xf32>
    %178 = arith.mulf %176, %177 : vector<2x8x32xf32>
    %179 = math.exp %178 : vector<2x8x32xf32>
    %180 = vector.extract_strided_slice %138 {offsets = [0, 1, 0], sizes = [2, 1, 8], strides = [1, 1, 1]} : vector<2x8x8xf32> to vector<2x1x8xf32>
    %181 = vector.shape_cast %180 : vector<2x1x8xf32> to vector<2x8xf32>
    %182 = vector.shape_cast %181 : vector<2x8xf32> to vector<2x8x1xf32>
    %183 = vector.extract_strided_slice %136 {offsets = [0, 1, 0], sizes = [2, 1, 32], strides = [1, 1, 1]} : vector<2x8x32xf32> to vector<2x1x32xf32>
    %184 = vector.shape_cast %183 : vector<2x1x32xf32> to vector<2x32xf32>
    %185 = vector.shape_cast %184 : vector<2x32xf32> to vector<2x1x32xf32>
    %186 = vector.broadcast %182 : vector<2x8x1xf32> to vector<2x8x32xf32>
    %187 = vector.broadcast %185 : vector<2x1x32xf32> to vector<2x8x32xf32>
    %188 = arith.mulf %186, %187 : vector<2x8x32xf32>
    %189 = arith.mulf %179, %179 : vector<2x8x32xf32>
    %cst_78 = arith.constant 1.000000e+00 : f32
    %190 = vector.broadcast %cst_78 : f32 to vector<2x8x32xf32>
    %191 = arith.subf %190, %189 : vector<2x8x32xf32>
    %cst_79 = arith.constant 9.99999997E-7 : f32
    %192 = vector.broadcast %cst_79 : f32 to vector<2x8x32xf32>
    %193 = arith.addf %191, %192 : vector<2x8x32xf32>
    %194 = math.sqrt %193 : vector<2x8x32xf32>
    %195 = arith.mulf %194, %188 : vector<2x8x32xf32>
    %196 = arith.mulf %179, %166 : vector<2x8x32xf32>
    %197 = arith.addf %196, %195 : vector<2x8x32xf32>
    %198 = vector.extract_strided_slice %140 {offsets = [0, 1, 0], sizes = [2, 1, 8], strides = [1, 1, 1]} : vector<2x8x8xf32> to vector<2x1x8xf32>
    %199 = vector.shape_cast %198 : vector<2x1x8xf32> to vector<2x8xf32>
    %200 = vector.shape_cast %199 : vector<2x8xf32> to vector<2x8x1xf32>
    %201 = vector.broadcast %200 : vector<2x8x1xf32> to vector<2x8x32xf32>
    %202 = arith.mulf %201, %197 : vector<2x8x32xf32>
    %cst_80 = arith.constant dense<0.000000e+00> : vector<2x32xf32>
    %203 = vector.multi_reduction <add>, %202, %cst_80 [1] : vector<2x8x32xf32> to vector<2x32xf32>
    %204 = vector.extract_strided_slice %134 {offsets = [0, 2, 0], sizes = [2, 1, 32], strides = [1, 1, 1]} : vector<2x8x32xf32> to vector<2x1x32xf32>
    %205 = vector.shape_cast %204 : vector<2x1x32xf32> to vector<2x32xf32>
    %206 = vector.shape_cast %205 : vector<2x32xf32> to vector<2x1x32xf32>
    %207 = vector.broadcast %206 : vector<2x1x32xf32> to vector<2x8x32xf32>
    %208 = vector.broadcast %126 : vector<1x8x32xf32> to vector<2x8x32xf32>
    %209 = arith.mulf %207, %208 : vector<2x8x32xf32>
    %210 = math.exp %209 : vector<2x8x32xf32>
    %211 = vector.extract_strided_slice %138 {offsets = [0, 2, 0], sizes = [2, 1, 8], strides = [1, 1, 1]} : vector<2x8x8xf32> to vector<2x1x8xf32>
    %212 = vector.shape_cast %211 : vector<2x1x8xf32> to vector<2x8xf32>
    %213 = vector.shape_cast %212 : vector<2x8xf32> to vector<2x8x1xf32>
    %214 = vector.extract_strided_slice %136 {offsets = [0, 2, 0], sizes = [2, 1, 32], strides = [1, 1, 1]} : vector<2x8x32xf32> to vector<2x1x32xf32>
    %215 = vector.shape_cast %214 : vector<2x1x32xf32> to vector<2x32xf32>
    %216 = vector.shape_cast %215 : vector<2x32xf32> to vector<2x1x32xf32>
    %217 = vector.broadcast %213 : vector<2x8x1xf32> to vector<2x8x32xf32>
    %218 = vector.broadcast %216 : vector<2x1x32xf32> to vector<2x8x32xf32>
    %219 = arith.mulf %217, %218 : vector<2x8x32xf32>
    %220 = arith.mulf %210, %210 : vector<2x8x32xf32>
    %cst_81 = arith.constant 1.000000e+00 : f32
    %221 = vector.broadcast %cst_81 : f32 to vector<2x8x32xf32>
    %222 = arith.subf %221, %220 : vector<2x8x32xf32>
    %cst_82 = arith.constant 9.99999997E-7 : f32
    %223 = vector.broadcast %cst_82 : f32 to vector<2x8x32xf32>
    %224 = arith.addf %222, %223 : vector<2x8x32xf32>
    %225 = math.sqrt %224 : vector<2x8x32xf32>
    %226 = arith.mulf %225, %219 : vector<2x8x32xf32>
    %227 = arith.mulf %210, %197 : vector<2x8x32xf32>
    %228 = arith.addf %227, %226 : vector<2x8x32xf32>
    %229 = vector.extract_strided_slice %140 {offsets = [0, 2, 0], sizes = [2, 1, 8], strides = [1, 1, 1]} : vector<2x8x8xf32> to vector<2x1x8xf32>
    %230 = vector.shape_cast %229 : vector<2x1x8xf32> to vector<2x8xf32>
    %231 = vector.shape_cast %230 : vector<2x8xf32> to vector<2x8x1xf32>
    %232 = vector.broadcast %231 : vector<2x8x1xf32> to vector<2x8x32xf32>
    %233 = arith.mulf %232, %228 : vector<2x8x32xf32>
    %cst_83 = arith.constant dense<0.000000e+00> : vector<2x32xf32>
    %234 = vector.multi_reduction <add>, %233, %cst_83 [1] : vector<2x8x32xf32> to vector<2x32xf32>
    %235 = vector.extract_strided_slice %134 {offsets = [0, 3, 0], sizes = [2, 1, 32], strides = [1, 1, 1]} : vector<2x8x32xf32> to vector<2x1x32xf32>
    %236 = vector.shape_cast %235 : vector<2x1x32xf32> to vector<2x32xf32>
    %237 = vector.shape_cast %236 : vector<2x32xf32> to vector<2x1x32xf32>
    %238 = vector.broadcast %237 : vector<2x1x32xf32> to vector<2x8x32xf32>
    %239 = vector.broadcast %126 : vector<1x8x32xf32> to vector<2x8x32xf32>
    %240 = arith.mulf %238, %239 : vector<2x8x32xf32>
    %241 = math.exp %240 : vector<2x8x32xf32>
    %242 = vector.extract_strided_slice %138 {offsets = [0, 3, 0], sizes = [2, 1, 8], strides = [1, 1, 1]} : vector<2x8x8xf32> to vector<2x1x8xf32>
    %243 = vector.shape_cast %242 : vector<2x1x8xf32> to vector<2x8xf32>
    %244 = vector.shape_cast %243 : vector<2x8xf32> to vector<2x8x1xf32>
    %245 = vector.extract_strided_slice %136 {offsets = [0, 3, 0], sizes = [2, 1, 32], strides = [1, 1, 1]} : vector<2x8x32xf32> to vector<2x1x32xf32>
    %246 = vector.shape_cast %245 : vector<2x1x32xf32> to vector<2x32xf32>
    %247 = vector.shape_cast %246 : vector<2x32xf32> to vector<2x1x32xf32>
    %248 = vector.broadcast %244 : vector<2x8x1xf32> to vector<2x8x32xf32>
    %249 = vector.broadcast %247 : vector<2x1x32xf32> to vector<2x8x32xf32>
    %250 = arith.mulf %248, %249 : vector<2x8x32xf32>
    %251 = arith.mulf %241, %241 : vector<2x8x32xf32>
    %cst_84 = arith.constant 1.000000e+00 : f32
    %252 = vector.broadcast %cst_84 : f32 to vector<2x8x32xf32>
    %253 = arith.subf %252, %251 : vector<2x8x32xf32>
    %cst_85 = arith.constant 9.99999997E-7 : f32
    %254 = vector.broadcast %cst_85 : f32 to vector<2x8x32xf32>
    %255 = arith.addf %253, %254 : vector<2x8x32xf32>
    %256 = math.sqrt %255 : vector<2x8x32xf32>
    %257 = arith.mulf %256, %250 : vector<2x8x32xf32>
    %258 = arith.mulf %241, %228 : vector<2x8x32xf32>
    %259 = arith.addf %258, %257 : vector<2x8x32xf32>
    %260 = vector.extract_strided_slice %140 {offsets = [0, 3, 0], sizes = [2, 1, 8], strides = [1, 1, 1]} : vector<2x8x8xf32> to vector<2x1x8xf32>
    %261 = vector.shape_cast %260 : vector<2x1x8xf32> to vector<2x8xf32>
    %262 = vector.shape_cast %261 : vector<2x8xf32> to vector<2x8x1xf32>
    %263 = vector.broadcast %262 : vector<2x8x1xf32> to vector<2x8x32xf32>
    %264 = arith.mulf %263, %259 : vector<2x8x32xf32>
    %cst_86 = arith.constant dense<0.000000e+00> : vector<2x32xf32>
    %265 = vector.multi_reduction <add>, %264, %cst_86 [1] : vector<2x8x32xf32> to vector<2x32xf32>
    %266 = vector.extract_strided_slice %134 {offsets = [0, 4, 0], sizes = [2, 1, 32], strides = [1, 1, 1]} : vector<2x8x32xf32> to vector<2x1x32xf32>
    %267 = vector.shape_cast %266 : vector<2x1x32xf32> to vector<2x32xf32>
    %268 = vector.shape_cast %267 : vector<2x32xf32> to vector<2x1x32xf32>
    %269 = vector.broadcast %268 : vector<2x1x32xf32> to vector<2x8x32xf32>
    %270 = vector.broadcast %126 : vector<1x8x32xf32> to vector<2x8x32xf32>
    %271 = arith.mulf %269, %270 : vector<2x8x32xf32>
    %272 = math.exp %271 : vector<2x8x32xf32>
    %273 = vector.extract_strided_slice %138 {offsets = [0, 4, 0], sizes = [2, 1, 8], strides = [1, 1, 1]} : vector<2x8x8xf32> to vector<2x1x8xf32>
    %274 = vector.shape_cast %273 : vector<2x1x8xf32> to vector<2x8xf32>
    %275 = vector.shape_cast %274 : vector<2x8xf32> to vector<2x8x1xf32>
    %276 = vector.extract_strided_slice %136 {offsets = [0, 4, 0], sizes = [2, 1, 32], strides = [1, 1, 1]} : vector<2x8x32xf32> to vector<2x1x32xf32>
    %277 = vector.shape_cast %276 : vector<2x1x32xf32> to vector<2x32xf32>
    %278 = vector.shape_cast %277 : vector<2x32xf32> to vector<2x1x32xf32>
    %279 = vector.broadcast %275 : vector<2x8x1xf32> to vector<2x8x32xf32>
    %280 = vector.broadcast %278 : vector<2x1x32xf32> to vector<2x8x32xf32>
    %281 = arith.mulf %279, %280 : vector<2x8x32xf32>
    %282 = arith.mulf %272, %272 : vector<2x8x32xf32>
    %cst_87 = arith.constant 1.000000e+00 : f32
    %283 = vector.broadcast %cst_87 : f32 to vector<2x8x32xf32>
    %284 = arith.subf %283, %282 : vector<2x8x32xf32>
    %cst_88 = arith.constant 9.99999997E-7 : f32
    %285 = vector.broadcast %cst_88 : f32 to vector<2x8x32xf32>
    %286 = arith.addf %284, %285 : vector<2x8x32xf32>
    %287 = math.sqrt %286 : vector<2x8x32xf32>
    %288 = arith.mulf %287, %281 : vector<2x8x32xf32>
    %289 = arith.mulf %272, %259 : vector<2x8x32xf32>
    %290 = arith.addf %289, %288 : vector<2x8x32xf32>
    %291 = vector.extract_strided_slice %140 {offsets = [0, 4, 0], sizes = [2, 1, 8], strides = [1, 1, 1]} : vector<2x8x8xf32> to vector<2x1x8xf32>
    %292 = vector.shape_cast %291 : vector<2x1x8xf32> to vector<2x8xf32>
    %293 = vector.shape_cast %292 : vector<2x8xf32> to vector<2x8x1xf32>
    %294 = vector.broadcast %293 : vector<2x8x1xf32> to vector<2x8x32xf32>
    %295 = arith.mulf %294, %290 : vector<2x8x32xf32>
    %cst_89 = arith.constant dense<0.000000e+00> : vector<2x32xf32>
    %296 = vector.multi_reduction <add>, %295, %cst_89 [1] : vector<2x8x32xf32> to vector<2x32xf32>
    %297 = vector.extract_strided_slice %134 {offsets = [0, 5, 0], sizes = [2, 1, 32], strides = [1, 1, 1]} : vector<2x8x32xf32> to vector<2x1x32xf32>
    %298 = vector.shape_cast %297 : vector<2x1x32xf32> to vector<2x32xf32>
    %299 = vector.shape_cast %298 : vector<2x32xf32> to vector<2x1x32xf32>
    %300 = vector.broadcast %299 : vector<2x1x32xf32> to vector<2x8x32xf32>
    %301 = vector.broadcast %126 : vector<1x8x32xf32> to vector<2x8x32xf32>
    %302 = arith.mulf %300, %301 : vector<2x8x32xf32>
    %303 = math.exp %302 : vector<2x8x32xf32>
    %304 = vector.extract_strided_slice %138 {offsets = [0, 5, 0], sizes = [2, 1, 8], strides = [1, 1, 1]} : vector<2x8x8xf32> to vector<2x1x8xf32>
    %305 = vector.shape_cast %304 : vector<2x1x8xf32> to vector<2x8xf32>
    %306 = vector.shape_cast %305 : vector<2x8xf32> to vector<2x8x1xf32>
    %307 = vector.extract_strided_slice %136 {offsets = [0, 5, 0], sizes = [2, 1, 32], strides = [1, 1, 1]} : vector<2x8x32xf32> to vector<2x1x32xf32>
    %308 = vector.shape_cast %307 : vector<2x1x32xf32> to vector<2x32xf32>
    %309 = vector.shape_cast %308 : vector<2x32xf32> to vector<2x1x32xf32>
    %310 = vector.broadcast %306 : vector<2x8x1xf32> to vector<2x8x32xf32>
    %311 = vector.broadcast %309 : vector<2x1x32xf32> to vector<2x8x32xf32>
    %312 = arith.mulf %310, %311 : vector<2x8x32xf32>
    %313 = arith.mulf %303, %303 : vector<2x8x32xf32>
    %cst_90 = arith.constant 1.000000e+00 : f32
    %314 = vector.broadcast %cst_90 : f32 to vector<2x8x32xf32>
    %315 = arith.subf %314, %313 : vector<2x8x32xf32>
    %cst_91 = arith.constant 9.99999997E-7 : f32
    %316 = vector.broadcast %cst_91 : f32 to vector<2x8x32xf32>
    %317 = arith.addf %315, %316 : vector<2x8x32xf32>
    %318 = math.sqrt %317 : vector<2x8x32xf32>
    %319 = arith.mulf %318, %312 : vector<2x8x32xf32>
    %320 = arith.mulf %303, %290 : vector<2x8x32xf32>
    %321 = arith.addf %320, %319 : vector<2x8x32xf32>
    %322 = vector.extract_strided_slice %140 {offsets = [0, 5, 0], sizes = [2, 1, 8], strides = [1, 1, 1]} : vector<2x8x8xf32> to vector<2x1x8xf32>
    %323 = vector.shape_cast %322 : vector<2x1x8xf32> to vector<2x8xf32>
    %324 = vector.shape_cast %323 : vector<2x8xf32> to vector<2x8x1xf32>
    %325 = vector.broadcast %324 : vector<2x8x1xf32> to vector<2x8x32xf32>
    %326 = arith.mulf %325, %321 : vector<2x8x32xf32>
    %cst_92 = arith.constant dense<0.000000e+00> : vector<2x32xf32>
    %327 = vector.multi_reduction <add>, %326, %cst_92 [1] : vector<2x8x32xf32> to vector<2x32xf32>
    %328 = vector.extract_strided_slice %134 {offsets = [0, 6, 0], sizes = [2, 1, 32], strides = [1, 1, 1]} : vector<2x8x32xf32> to vector<2x1x32xf32>
    %329 = vector.shape_cast %328 : vector<2x1x32xf32> to vector<2x32xf32>
    %330 = vector.shape_cast %329 : vector<2x32xf32> to vector<2x1x32xf32>
    %331 = vector.broadcast %330 : vector<2x1x32xf32> to vector<2x8x32xf32>
    %332 = vector.broadcast %126 : vector<1x8x32xf32> to vector<2x8x32xf32>
    %333 = arith.mulf %331, %332 : vector<2x8x32xf32>
    %334 = math.exp %333 : vector<2x8x32xf32>
    %335 = vector.extract_strided_slice %138 {offsets = [0, 6, 0], sizes = [2, 1, 8], strides = [1, 1, 1]} : vector<2x8x8xf32> to vector<2x1x8xf32>
    %336 = vector.shape_cast %335 : vector<2x1x8xf32> to vector<2x8xf32>
    %337 = vector.shape_cast %336 : vector<2x8xf32> to vector<2x8x1xf32>
    %338 = vector.extract_strided_slice %136 {offsets = [0, 6, 0], sizes = [2, 1, 32], strides = [1, 1, 1]} : vector<2x8x32xf32> to vector<2x1x32xf32>
    %339 = vector.shape_cast %338 : vector<2x1x32xf32> to vector<2x32xf32>
    %340 = vector.shape_cast %339 : vector<2x32xf32> to vector<2x1x32xf32>
    %341 = vector.broadcast %337 : vector<2x8x1xf32> to vector<2x8x32xf32>
    %342 = vector.broadcast %340 : vector<2x1x32xf32> to vector<2x8x32xf32>
    %343 = arith.mulf %341, %342 : vector<2x8x32xf32>
    %344 = arith.mulf %334, %334 : vector<2x8x32xf32>
    %cst_93 = arith.constant 1.000000e+00 : f32
    %345 = vector.broadcast %cst_93 : f32 to vector<2x8x32xf32>
    %346 = arith.subf %345, %344 : vector<2x8x32xf32>
    %cst_94 = arith.constant 9.99999997E-7 : f32
    %347 = vector.broadcast %cst_94 : f32 to vector<2x8x32xf32>
    %348 = arith.addf %346, %347 : vector<2x8x32xf32>
    %349 = math.sqrt %348 : vector<2x8x32xf32>
    %350 = arith.mulf %349, %343 : vector<2x8x32xf32>
    %351 = arith.mulf %334, %321 : vector<2x8x32xf32>
    %352 = arith.addf %351, %350 : vector<2x8x32xf32>
    %353 = vector.extract_strided_slice %140 {offsets = [0, 6, 0], sizes = [2, 1, 8], strides = [1, 1, 1]} : vector<2x8x8xf32> to vector<2x1x8xf32>
    %354 = vector.shape_cast %353 : vector<2x1x8xf32> to vector<2x8xf32>
    %355 = vector.shape_cast %354 : vector<2x8xf32> to vector<2x8x1xf32>
    %356 = vector.broadcast %355 : vector<2x8x1xf32> to vector<2x8x32xf32>
    %357 = arith.mulf %356, %352 : vector<2x8x32xf32>
    %cst_95 = arith.constant dense<0.000000e+00> : vector<2x32xf32>
    %358 = vector.multi_reduction <add>, %357, %cst_95 [1] : vector<2x8x32xf32> to vector<2x32xf32>
    %359 = vector.extract_strided_slice %134 {offsets = [0, 7, 0], sizes = [2, 1, 32], strides = [1, 1, 1]} : vector<2x8x32xf32> to vector<2x1x32xf32>
    %360 = vector.shape_cast %359 : vector<2x1x32xf32> to vector<2x32xf32>
    %361 = vector.shape_cast %360 : vector<2x32xf32> to vector<2x1x32xf32>
    %362 = vector.broadcast %361 : vector<2x1x32xf32> to vector<2x8x32xf32>
    %363 = vector.broadcast %126 : vector<1x8x32xf32> to vector<2x8x32xf32>
    %364 = arith.mulf %362, %363 : vector<2x8x32xf32>
    %365 = math.exp %364 : vector<2x8x32xf32>
    %366 = vector.extract_strided_slice %138 {offsets = [0, 7, 0], sizes = [2, 1, 8], strides = [1, 1, 1]} : vector<2x8x8xf32> to vector<2x1x8xf32>
    %367 = vector.shape_cast %366 : vector<2x1x8xf32> to vector<2x8xf32>
    %368 = vector.shape_cast %367 : vector<2x8xf32> to vector<2x8x1xf32>
    %369 = vector.extract_strided_slice %136 {offsets = [0, 7, 0], sizes = [2, 1, 32], strides = [1, 1, 1]} : vector<2x8x32xf32> to vector<2x1x32xf32>
    %370 = vector.shape_cast %369 : vector<2x1x32xf32> to vector<2x32xf32>
    %371 = vector.shape_cast %370 : vector<2x32xf32> to vector<2x1x32xf32>
    %372 = vector.broadcast %368 : vector<2x8x1xf32> to vector<2x8x32xf32>
    %373 = vector.broadcast %371 : vector<2x1x32xf32> to vector<2x8x32xf32>
    %374 = arith.mulf %372, %373 : vector<2x8x32xf32>
    %375 = arith.mulf %365, %365 : vector<2x8x32xf32>
    %cst_96 = arith.constant 1.000000e+00 : f32
    %376 = vector.broadcast %cst_96 : f32 to vector<2x8x32xf32>
    %377 = arith.subf %376, %375 : vector<2x8x32xf32>
    %cst_97 = arith.constant 9.99999997E-7 : f32
    %378 = vector.broadcast %cst_97 : f32 to vector<2x8x32xf32>
    %379 = arith.addf %377, %378 : vector<2x8x32xf32>
    %380 = math.sqrt %379 : vector<2x8x32xf32>
    %381 = arith.mulf %380, %374 : vector<2x8x32xf32>
    %382 = arith.mulf %365, %352 : vector<2x8x32xf32>
    %383 = arith.addf %382, %381 : vector<2x8x32xf32>
    %384 = vector.extract_strided_slice %140 {offsets = [0, 7, 0], sizes = [2, 1, 8], strides = [1, 1, 1]} : vector<2x8x8xf32> to vector<2x1x8xf32>
    %385 = vector.shape_cast %384 : vector<2x1x8xf32> to vector<2x8xf32>
    %386 = vector.shape_cast %385 : vector<2x8xf32> to vector<2x8x1xf32>
    %387 = vector.broadcast %386 : vector<2x8x1xf32> to vector<2x8x32xf32>
    %388 = arith.mulf %387, %383 : vector<2x8x32xf32>
    %cst_98 = arith.constant dense<0.000000e+00> : vector<2x32xf32>
    %389 = vector.multi_reduction <add>, %388, %cst_98 [1] : vector<2x8x32xf32> to vector<2x32xf32>
    %c0_99 = arith.constant 0 : index
    %c0_100 = arith.constant 0 : index
    %c0_101 = arith.constant 0 : index
    %390 = vector.load %arg16[%c0_99, %c0_100, %c0_101] : memref<2x8x32xf32, #tpu.memory_space<vmem>>, vector<2x8x32xf32>
    tpu.vector_store %arg16[%c0_99, %c0_100, %c0_101], %383 {strides = array<i32>} : memref<2x8x32xf32, #tpu.memory_space<vmem>>, vector<2x8x32xf32>,
    %391 = vector.shape_cast %172 : vector<2x32xf32> to vector<2x1x32xf32>
    %392 = vector.shape_cast %203 : vector<2x32xf32> to vector<2x1x32xf32>
    %393 = vector.shape_cast %234 : vector<2x32xf32> to vector<2x1x32xf32>
    %394 = vector.shape_cast %265 : vector<2x32xf32> to vector<2x1x32xf32>
    %395 = vector.shape_cast %296 : vector<2x32xf32> to vector<2x1x32xf32>
    %396 = vector.shape_cast %327 : vector<2x32xf32> to vector<2x1x32xf32>
    %397 = vector.shape_cast %358 : vector<2x32xf32> to vector<2x1x32xf32>
    %398 = vector.shape_cast %389 : vector<2x32xf32> to vector<2x1x32xf32>
    %399 = tpu.concatenate %391, %392, %393, %394, %395, %396, %397, %398 in 1 : vector<2x1x32xf32>, vector<2x1x32xf32>, vector<2x1x32xf32>, vector<2x1x32xf32>, vector<2x1x32xf32>, vector<2x1x32xf32>, vector<2x1x32xf32>, vector<2x1x32xf32> -> vector<2x8x32xf32>
    %c0_102 = arith.constant 0 : index
    %400 = arith.index_cast %132 : i32 to index
    %c0_103 = arith.constant 0 : index
    %401 = vector.load %arg15[%c0_102, %400, %c0_103] : memref<2x8x32xf32, #tpu.memory_space<vmem>>, vector<2x8x32xf32>
    tpu.vector_store %arg15[%c0_102, %400, %c0_103], %399 {strides = array<i32>} : memref<2x8x32xf32, #tpu.memory_space<vmem>>, vector<2x8x32xf32>,
    %c1_i32_104 = arith.constant 1 : i32
    %c0_105 = arith.constant 0 : index
    %c0_106 = arith.constant 0 : index
    %c0_107 = arith.constant 0 : index
    %402 = vector.load %arg10[%c0_105, %c0_106, %c0_107] : memref<2x8x32xf32, #tpu.memory_space<vmem>>, vector<2x8x32xf32>
    %c0_108 = arith.constant 0 : index
    %c0_109 = arith.constant 0 : index
    %c0_110 = arith.constant 0 : index
    %403 = vector.load %arg15[%c0_108, %c0_109, %c0_110] : memref<2x8x32xf32, #tpu.memory_space<vmem>>, vector<2x8x32xf32>
    %404 = arith.mulf %402, %403 : vector<2x8x32xf32>
    %405 = vector.shape_cast %404 : vector<2x8x32xf32> to vector<16x32xf32>
    %c0_111 = arith.constant 0 : index
    %c0_112 = arith.constant 0 : index
    %406 = vector.load %arg8[%c0_111, %c0_112] : memref<32x32xf32, #tpu.memory_space<vmem>>, vector<32x32xf32>
    %cst_113 = arith.constant dense<0.000000e+00> : vector<16x32xf32>
    %407 = tpu.matmul %405, %406, %cst_113 {dimension_numbers = #tpu.dot_dimension_numbers<[1], [0], [0], [1], [0, 0, 1, 1], [], []>} : vector<16x32xf32>, vector<32x32xf32>, vector<16x32xf32> -> vector<16x32xf32>
    %408 = vector.shape_cast %407 : vector<16x32xf32> to vector<2x8x32xf32>
    %c0_114 = arith.constant 0 : index
    %c0_115 = arith.constant 0 : index
    %c0_116 = arith.constant 0 : index
    %409 = vector.load %arg9[%c0_114, %c0_115, %c0_116] : memref<2x8x32xf32, #tpu.memory_space<vmem>>, vector<2x8x32xf32>
    tpu.vector_store %arg9[%c0_114, %c0_115, %c0_116], %408 {strides = array<i32>} : memref<2x8x32xf32, #tpu.memory_space<vmem>>, vector<2x8x32xf32>,
    return
  }
  func.func @transform_0(%arg0: i32) -> (i32, i32, i32) {
    %c0_i32 = arith.constant 0 : i32
    %c0_i32_0 = arith.constant 0 : i32
    %c0_i32_1 = arith.constant 0 : i32
    return %arg0, %c0_i32, %c0_i32_0 : i32, i32, i32
  }
  func.func @transform_1(%arg0: i32) -> (i32, i32) {
    %c0_i32 = arith.constant 0 : i32
    %c0_i32_0 = arith.constant 0 : i32
    %c0_i32_1 = arith.constant 0 : i32
    return %c0_i32, %c0_i32_0 : i32, i32
  }
  func.func @transform_2(%arg0: i32) -> (i32, i32) {
    %c0_i32 = arith.constant 0 : i32
    %c0_i32_0 = arith.constant 0 : i32
    %c0_i32_1 = arith.constant 0 : i32
    return %c0_i32, %c0_i32_0 : i32, i32
  }
  func.func @transform_3(%arg0: i32) -> (i32, i32) {
    %c0_i32 = arith.constant 0 : i32
    %c0_i32_0 = arith.constant 0 : i32
    %c0_i32_1 = arith.constant 0 : i32
    return %c0_i32, %c0_i32_0 : i32, i32
  }
  func.func @transform_4(%arg0: i32) -> (i32, i32) {
    %c0_i32 = arith.constant 0 : i32
    %c0_i32_0 = arith.constant 0 : i32
    %c0_i32_1 = arith.constant 0 : i32
    return %c0_i32, %c0_i32_0 : i32, i32
  }
  func.func @transform_5(%arg0: i32) -> (i32, i32) {
    %c0_i32 = arith.constant 0 : i32
    %c0_i32_0 = arith.constant 0 : i32
    %c0_i32_1 = arith.constant 0 : i32
    return %c0_i32, %c0_i32_0 : i32, i32
  }
  func.func @transform_6(%arg0: i32) -> (i32, i32) {
    %c0_i32 = arith.constant 0 : i32
    %c0_i32_0 = arith.constant 0 : i32
    %c0_i32_1 = arith.constant 0 : i32
    return %c0_i32, %c0_i32_0 : i32, i32
  }
  func.func @transform_7(%arg0: i32) -> (i32, i32) {
    %c0_i32 = arith.constant 0 : i32
    %c0_i32_0 = arith.constant 0 : i32
    %c0_i32_1 = arith.constant 0 : i32
    return %c0_i32, %c0_i32_0 : i32, i32
  }
  func.func @transform_8(%arg0: i32) -> (i32, i32, i32) {
    %c0_i32 = arith.constant 0 : i32
    %c0_i32_0 = arith.constant 0 : i32
    %c0_i32_1 = arith.constant 0 : i32
    return %arg0, %c0_i32, %c0_i32_0 : i32, i32, i32
  }
}

</mosaic_0001>

<llo_original>
// kernel: tpu_custom_call.1
$region0: #{tpu_custom_call.1}
  #allocation0 [shape = 'u32[]', space=smem, size = 0x4, offset = 0x4, fixed_abs, tag = 'smem constant byte address 0x4 - core index']
  #allocation1 [shape = 'u32[72,128]{1,0:T(1,128)}', space=vmem, size = 0x9000, scoped, tag = 'internal scratch']
  #allocation2 [shape = 'f32[2,8,32]{2,1,0:T(8,128)}', space=vmem, size = 0x2000, scoped, tag = 'scratch operand']
  #allocation3 [shape = 'f32[2,8,32]{2,1,0:T(8,128)}', space=vmem, size = 0x2000, scoped, tag = 'scratch operand']
  #allocation4 [shape = 'f32[2,8,32]{2,1,0:T(8,128)}', space=vmem, size = 0x2000, scoped, tag = 'scratch operand']
  #allocation5 [shape = 'f32[2,8,8]{2,1,0:T(8,128)}', space=vmem, size = 0x2000, scoped, tag = 'scratch operand']
  #allocation6 [shape = 'f32[2,8,8]{2,1,0:T(8,128)}', space=vmem, size = 0x2000, scoped, tag = 'scratch operand']
  #allocation7 [shape = 'f32[2,8,32]{2,1,0:T(8,128)}', space=vmem, size = 0x2000, scoped, tag = 'scratch operand']
  #allocation8 [shape = 'f32[2,8,32]{2,1,0:T(8,128)}', space=vmem, size = 0x2000, scoped, tag = 'scratch operand']
  %s0 = inlined_call_operand.hbm [shape: f32[2,8,32], index: 0, kind: input, shape index: {}]
  %s1 = inlined_call_operand.hbm [shape: f32[32,64], index: 1, kind: input, shape index: {}]
  %s2 = inlined_call_operand.hbm [shape: f32[4,32], index: 2, kind: input, shape index: {}]
  %s3 = inlined_call_operand.vmem [shape: f32[1,32], index: 3, kind: input, shape index: {}]
  %s4 = inlined_call_operand.hbm [shape: f32[32,48], index: 4, kind: input, shape index: {}]
  %s5 = inlined_call_operand.vmem [shape: f32[1,48], index: 5, kind: input, shape index: {}]
  %s6 = inlined_call_operand.hbm [shape: f32[8,32], index: 6, kind: input, shape index: {}]
  %s7 = inlined_call_operand.hbm [shape: f32[32,32], index: 7, kind: input, shape index: {}]
  %s8 = inlined_call_operand.hbm [shape: f32[2,8,32], index: 8, kind: output, shape index: {}]
  %s9 = sld [smem:[#allocation0]]
  $region66: #{tpu_custom_call.1} parent=0
    _
  %s11 = ssub.s32 1, %s9
  %s12 = scalar_select 0, %s11, %s9
  $region1: #{tpu_custom_call.1} parent=0
    #allocation9 [shape = 'u8[8192]{0}', space=vmem, size = 0x2000, scoped, tag = 'input window, operand 0, single buffered']
    #allocation10 [shape = 's32[1]{0}', space=sflag, size = 0x4, scoped, tag = 'scoped memory for tpu_custom_call.1']
    #allocation11 [shape = 's32[1]{0}', space=sflag, size = 0x4, scoped, tag = 'scoped memory for tpu_custom_call.1']
    #allocation12 [shape = 'u8[16384]{0}', space=vmem, size = 0x4000, scoped, tag = 'input window, operand 1, single buffered']
    #allocation13 [shape = 's32[1]{0}', space=sflag, size = 0x4, scoped, tag = 'scoped memory for tpu_custom_call.1']
    #allocation14 [shape = 'u8[2048]{0}', space=vmem, size = 0x800, scoped, tag = 'input window, operand 2, single buffered']
    #allocation15 [shape = 'u8[16384]{0}', space=vmem, size = 0x4000, scoped, tag = 'input window, operand 4, single buffered']
    #allocation16 [shape = 's32[1]{0}', space=sflag, size = 0x4, scoped, tag = 'scoped memory for tpu_custom_call.1']
    #allocation17 [shape = 'u8[4096]{0}', space=vmem, size = 0x1000, scoped, tag = 'input window, operand 6, single buffered']
    #allocation18 [shape = 'u8[16384]{0}', space=vmem, size = 0x4000, scoped, tag = 'input window, operand 7, single buffered']
    #allocation19 [shape = 's32[1]{0}', space=sflag, size = 0x4, scoped, tag = 'scoped memory for tpu_custom_call.1']
    #allocation20 [shape = 'u8[8192]{0}', space=vmem, size = 0x2000, scoped, tag = 'output window, operand 0, single buffered']
    %13 = vsyncpa [#allocation10], 0
    %14 = vsyncpa [#allocation13], 0
    %15 = vsyncpa [#allocation16], 0
    %16 = vsyncpa [#allocation19], 0
    %17 = vsyncpa [#allocation11], 0
    // Predicated region
    $region2: #{tpu_custom_call.1} parent=1 // pred_check
      _
    $region3: #{tpu_custom_call.1} parent=1 // pred_check_branch
      %19 = sbr.rel (0) target = $region5
    $region4: #{tpu_custom_call.1} parent=1 // pred_region
      %21 = vsyncadd [#allocation10], 0
      %s22 = sshll.u32 %s0, 4
      %s23 = int_to_ptr.hbm [resolvable:$true] %s22
      %s24 = sshll.u32 [#allocation9], 4
      %s25 = int_to_ptr.vmem [resolvable:$true] %s24
      %30 = dma.hbm_to_vmem [thread:$0]  %s23, 256, %s25, [#allocation10], 128, 128, 8
    $region5: #{tpu_custom_call.1} parent=1 // pred_fallthru
      _
    // Predicated region
    $region6: #{tpu_custom_call.1} parent=1 // pred_check
      _
    $region7: #{tpu_custom_call.1} parent=1 // pred_check_branch
      %32 = sbr.rel (0) target = $region9
    $region8: #{tpu_custom_call.1} parent=1 // pred_region
      %34 = vsyncadd [#allocation13], 0
      %s35 = sshll.u32 %s1, 4
      %s36 = int_to_ptr.hbm [resolvable:$true] %s35
      %s37 = sshll.u32 [#allocation12], 4
      %s38 = int_to_ptr.vmem [resolvable:$true] %s37
      %43 = dma.hbm_to_vmem [thread:$0]  %s36, 512, %s38, [#allocation13], 128, 128, 8
    $region9: #{tpu_custom_call.1} parent=1 // pred_fallthru
      _
    // Predicated region
    $region10: #{tpu_custom_call.1} parent=1 // pred_check
      _
    $region11: #{tpu_custom_call.1} parent=1 // pred_check_branch
      %45 = sbr.rel (0) target = $region13
    $region12: #{tpu_custom_call.1} parent=1 // pred_region
      %47 = vsyncadd [#allocation13], 0
      %s49 = sshll.u32 %s2, 4
      %s50 = int_to_ptr.hbm [resolvable:$true] %s49
      %s51 = sshll.u32 [#allocation14], 4
      %s52 = int_to_ptr.vmem [resolvable:$true] %s51
      %54 = dma.hbm_to_vmem [thread:$0]  %s50, 64, %s52, [#allocation13]
    $region13: #{tpu_custom_call.1} parent=1 // pred_fallthru
      _
    // Predicated region
    $region14: #{tpu_custom_call.1} parent=1 // pred_check
      _
    $region15: #{tpu_custom_call.1} parent=1 // pred_check_branch
      %56 = sbr.rel (0) target = $region17
    $region16: #{tpu_custom_call.1} parent=1 // pred_region
      _
    $region17: #{tpu_custom_call.1} parent=1 // pred_fallthru
      _
    // Predicated region
    $region18: #{tpu_custom_call.1} parent=1 // pred_check
      _
    $region19: #{tpu_custom_call.1} parent=1 // pred_check_branch
      %58 = sbr.rel (0) target = $region21
    $region20: #{tpu_custom_call.1} parent=1 // pred_region
      %60 = vsyncadd [#allocation16], 0
      %s61 = sshll.u32 %s4, 4
      %s62 = int_to_ptr.hbm [resolvable:$true] %s61
      %s63 = sshll.u32 [#allocation15], 4
      %s64 = int_to_ptr.vmem [resolvable:$true] %s63
      %69 = dma.hbm_to_vmem [thread:$0]  %s62, 512, %s64, [#allocation16], 128, 128, 8
    $region21: #{tpu_custom_call.1} parent=1 // pred_fallthru
      _
    // Predicated region
    $region22: #{tpu_custom_call.1} parent=1 // pred_check
      _
    $region23: #{tpu_custom_call.1} parent=1 // pred_check_branch
      %71 = sbr.rel (0) target = $region25
    $region24: #{tpu_custom_call.1} parent=1 // pred_region
      _
    $region25: #{tpu_custom_call.1} parent=1 // pred_fallthru
      _
    // Predicated region
    $region26: #{tpu_custom_call.1} parent=1 // pred_check
      _
    $region27: #{tpu_custom_call.1} parent=1 // pred_check_branch
      %73 = sbr.rel (0) target = $region29
    $region28: #{tpu_custom_call.1} parent=1 // pred_region
      %75 = vsyncadd [#allocation16], 0
      %s77 = sshll.u32 %s6, 4
      %s78 = int_to_ptr.hbm [resolvable:$true] %s77
      %s79 = sshll.u32 [#allocation17], 4
      %s80 = int_to_ptr.vmem [resolvable:$true] %s79
      %82 = dma.hbm_to_vmem [thread:$0]  %s78, 128, %s80, [#allocation16]
    $region29: #{tpu_custom_call.1} parent=1 // pred_fallthru
      _
    // Predicated region
    $region30: #{tpu_custom_call.1} parent=1 // pred_check
      _
    $region31: #{tpu_custom_call.1} parent=1 // pred_check_branch
      %84 = sbr.rel (0) target = $region33
    $region32: #{tpu_custom_call.1} parent=1 // pred_region
      %86 = vsyncadd [#allocation19], 0
      %s87 = sshll.u32 %s7, 4
      %s88 = int_to_ptr.hbm [resolvable:$true] %s87
      %s89 = sshll.u32 [#allocation18], 4
      %s90 = int_to_ptr.vmem [resolvable:$true] %s89
      %95 = dma.hbm_to_vmem [thread:$0]  %s88, 512, %s90, [#allocation19], 128, 128, 8
    $region33: #{tpu_custom_call.1} parent=1 // pred_fallthru
      _
    // Predicated region
    $region34: #{tpu_custom_call.1} parent=1 // pred_check
      _
    $region35: #{tpu_custom_call.1} parent=1 // pred_check_branch
      %97 = sbr.rel (0) target = $region37
    $region36: #{tpu_custom_call.1} parent=1 // pred_region
      %99 = dma.done [#allocation10], 256
    $region37: #{tpu_custom_call.1} parent=1 // pred_fallthru
      _
    // Predicated region
    $region38: #{tpu_custom_call.1} parent=1 // pred_check
      _
    $region39: #{tpu_custom_call.1} parent=1 // pred_check_branch
      %101 = sbr.rel (0) target = $region41
    $region40: #{tpu_custom_call.1} parent=1 // pred_region
      %103 = dma.done [#allocation13], 512
    $region41: #{tpu_custom_call.1} parent=1 // pred_fallthru
      _
    // Predicated region
    $region42: #{tpu_custom_call.1} parent=1 // pred_check
      _
    $region43: #{tpu_custom_call.1} parent=1 // pred_check_branch
      %105 = sbr.rel (0) target = $region45
    $region44: #{tpu_custom_call.1} parent=1 // pred_region
      %107 = dma.done [#allocation13], 64
    $region45: #{tpu_custom_call.1} parent=1 // pred_fallthru
      _
    // Predicated region
    $region46: #{tpu_custom_call.1} parent=1 // pred_check
      _
    $region47: #{tpu_custom_call.1} parent=1 // pred_check_branch
      %109 = sbr.rel (0) target = $region49
    $region48: #{tpu_custom_call.1} parent=1 // pred_region
      %111 = dma.done [#allocation16], 512
    $region49: #{tpu_custom_call.1} parent=1 // pred_fallthru
      _
    // Predicated region
    $region50: #{tpu_custom_call.1} parent=1 // pred_check
      _
    $region51: #{tpu_custom_call.1} parent=1 // pred_check_branch
      %113 = sbr.rel (0) target = $region53
    $region52: #{tpu_custom_call.1} parent=1 // pred_region
      %115 = dma.done [#allocation16], 128
    $region53: #{tpu_custom_call.1} parent=1 // pred_fallthru
      _
    // Predicated region
    $region54: #{tpu_custom_call.1} parent=1 // pred_check
      _
    $region55: #{tpu_custom_call.1} parent=1 // pred_check_branch
      %117 = sbr.rel (0) target = $region57
    $region56: #{tpu_custom_call.1} parent=1 // pred_region
      %119 = dma.done [#allocation19], 512
    $region57: #{tpu_custom_call.1} parent=1 // pred_fallthru
      _
    %v120 = vld [vmem:[#allocation9] sm:$0xff]
    %v121 = vld [vmem:[#allocation9 + $0x8] sm:$0xff]
    %v122 = vld [vmem:[#allocation12] sm:$0xff]
    %v123 = vld [vmem:[#allocation12 + $0x8] sm:$0xff]
    %v124 = vld [vmem:[#allocation12 + $0x10] sm:$0xff]
    %v125 = vld [vmem:[#allocation12 + $0x18] sm:$0xff]
    %vm126 = vcmask 261120
    %v128 = vsel %vm126, %v120, 0
    %v131 = vsel %vm126, %v121, 0
    %133 = vmatpush.msra.mxu0 0.0
    %134 = vmatpush.msra.mxu0 0.0
    %135 = vmatpush.msra.mxu0 0.0
    %136 = vmatpush.msra.mxu0 0.0
    %137 = vmatpush.msra.mxu0 0.0
    %138 = vmatpush.msra.mxu0 0.0
    %139 = vmatpush.msra.mxu0 0.0
    %140 = vmatpush.msra.mxu0 0.0
    %141 = vmatpush.msra.mxu0 0.0
    %142 = vmatpush.msra.mxu0 0.0
    %143 = vmatpush.msra.mxu0 0.0
    %144 = vmatpush.msra.mxu0 0.0
    %145 = vmatpush.msra.mxu0 %v125
    %146 = vmatpush.msra.mxu0 %v124
    %147 = vmatpush.msra.mxu0 %v123
    %148 = vmatpush.msra.mxu0 %v122
    %149 = vmatmul.f32.gmra.mxu0 %v128
    %v150 = vpop.f32.mrf.mxu0
    %v151 = vadd.f32 0.0, %v150
    %152 = vmatmul.f32.gmra.mxu0 %v131
    %v153 = vpop.f32.mrf.mxu0
    %v154 = vadd.f32 0.0, %v153
    %155 = vdwg.mxu0
    %v156 = vmul.f32 %v151, 0.5
    %v157 = vmul.f32 %v154, 0.5
    %v158 = vmul.f32 %v151, 0.70710677
    %v159 = vmul.f32 %v154, 0.70710677
    %v160 = vand.u32 2147483647, %v158
    %v161 = vand.u32 2147483647, %v159
    %v162 = vmul.f32 %v160, 0.3275911
    %v163 = vmul.f32 %v161, 0.3275911
    %v164 = vadd.f32 %v162, 1.0
    %v165 = vadd.f32 %v163, 1.0
    %v166 = vrcp.pop %v164
    %v167 = vmul.f32 %v164, %v166
    %v168 = vsub.f32 1.0, %v167
    %v169 = vmul.f32 %v166, %v168
    %v170 = vadd.f32 %v166, %v169
    %vm171 = vweird.f32 %v164
    %vm172 = vweird.f32 %v166
    %vm173 = vmor %vm171, %vm172
    %v174 = vsel %vm173, %v166, %v170
    %v175 = vand.u32 2147483647, %v164
    %vm176 = vcmp.eq.f32.partialorder %v175, 8.507059e+37
    %v177 = vand.u32 %v164, 2147483648
    %v178 = vor.u32 1.1754944e-38, %v177
    %v179 = vsel %vm176, %v178, %v174
    %v180 = vmul.f32 1.0, %v179
    %v181 = vrcp.pop %v165
    %v182 = vmul.f32 %v165, %v181
    %v183 = vsub.f32 1.0, %v182
    %v184 = vmul.f32 %v181, %v183
    %v185 = vadd.f32 %v181, %v184
    %vm186 = vweird.f32 %v165
    %vm187 = vweird.f32 %v181
    %vm188 = vmor %vm186, %vm187
    %v189 = vsel %vm188, %v181, %v185
    %v190 = vand.u32 2147483647, %v165
    %vm191 = vcmp.eq.f32.partialorder %v190, 8.507059e+37
    %v192 = vand.u32 %v165, 2147483648
    %v193 = vor.u32 1.1754944e-38, %v192
    %v194 = vsel %vm191, %v193, %v189
    %v195 = vmul.f32 1.0, %v194
    %v196 = vmul.f32 %v180, 1.0614054
    %v197 = vmul.f32 %v195, 1.0614054
    %v198 = vadd.f32 %v196, -1.4531521
    %v199 = vadd.f32 %v197, -1.4531521
    %v200 = vmul.f32 %v180, %v198
    %v201 = vmul.f32 %v195, %v199
    %v202 = vadd.f32 %v200, 1.4214138
    %v203 = vadd.f32 %v201, 1.4214138
    %v204 = vmul.f32 %v180, %v202
    %v205 = vmul.f32 %v195, %v203
    %v206 = vadd.f32 %v204, -0.28449672
    %v207 = vadd.f32 %v205, -0.28449672
    %v208 = vmul.f32 %v180, %v206
    %v209 = vmul.f32 %v195, %v207
    %v210 = vadd.f32 %v208, 0.2548296
    %v211 = vadd.f32 %v209, 0.2548296
    %v212 = vmul.f32 %v180, %v210
    %v213 = vmul.f32 %v195, %v211
    %v214 = vsub.f32 0.0, %v160
    %v215 = vsub.f32 0.0, %v161
    %v216 = vmul.f32 %v214, %v160
    %v217 = vmul.f32 %v215, %v161
    %v218 = vmul.f32 %v216, 1.442695
    %v219 = vpow.pop %v218
    %v220 = vmul.f32 %v217, 1.442695
    %v221 = vpow.pop %v220
    %v222 = vmul.f32 %v212, %v219
    %v223 = vmul.f32 %v213, %v221
    %v224 = vsub.f32 1.0, %v222
    %v225 = vsub.f32 1.0, %v223
    %vm226 = vcmp.ge.f32.partialorder %v158, 0.0
    %vm227 = vcmp.ge.f32.partialorder %v159, 0.0
    %v228 = vsub.f32 0.0, %v224
    %v229 = vsub.f32 0.0, %v225
    %v230 = vsel %vm226, %v224, %v228
    %v231 = vsel %vm227, %v225, %v229
    %v232 = vadd.f32 %v230, 1.0
    %v233 = vadd.f32 %v231, 1.0
    %v234 = vmul.f32 %v156, %v232
    %v235 = vmul.f32 %v157, %v233
    %236 = vst.msk [vmem:[#allocation2] sm:$0xff] %vm126, %v234
    %237 = vst.msk [vmem:[#allocation2 + $0x8] sm:$0xff] %vm126, %v235
    %v238 = vld [vmem:[#allocation14] sm:$0xf]
    %v239 = vlaneseq
    %v240 = vshrl.u32 %v239, 7
    %v241 = vperm.slane %v238, 3
    %243 = vrot.lane.b32.xlu0 %v241, 32
    %v244 = vpop.permute.xlu0 %243
    %v246 = vmul.f32 %v151, %v244
    %v247 = vmul.f32 %v154, %v244
    %250 = vrot.lane.b32.xlu0 %v151, 96
    %v251 = vpop.permute.xlu0 %250
    %252 = vrot.lane.b32.xlu0 %v154, 96
    %v253 = vpop.permute.xlu0 %252
    %v256 = vrot.slane %v251, 7
    %v257 = vrot.slane %v253, 7
    %vm258 = vcmp.lt.s32.totalorder %v240, 1
    %v259 = vsel %vm258, %v256, %v257
    %v260 = vsel %vm258, %v257, %v256
    %vm261 = vcmp.ge.s32.totalorder %v240, 1
    %v262 = vsel %vm261, 1, 0
    %vm263 = vcmp.eq.s32.totalorder %v262, 1
    %v264 = vsel %vm263, %v260, 0.0
    %v265 = vsel %vm263, %v259, 0.0
    %v266 = vperm.slane %v238, 2
    %v267 = vmul.f32 %v264, %v266
    %v268 = vmul.f32 %v265, %v266
    %271 = vrot.lane.b32.xlu0 %v267, 32
    %v272 = vpop.permute.xlu0 %271
    %273 = vrot.lane.b32.xlu0 %v268, 32
    %v274 = vpop.permute.xlu0 %273
    %v277 = vadd.f32 %v246, %v272
    %v278 = vadd.f32 %v247, %v274
    %v279 = vrot.slane %v251, 6
    %v280 = vrot.slane %v253, 6
    %vm281 = vcmp.lt.s32.totalorder %v240, 2
    %v282 = vsel %vm281, %v279, %v280
    %v283 = vsel %vm281, %v280, %v279
    %vm284 = vcmp.ge.s32.totalorder %v240, 2
    %v285 = vsel %vm284, 1, 0
    %vm286 = vcmp.eq.s32.totalorder %v285, 1
    %v287 = vsel %vm286, %v283, 0.0
    %v288 = vsel %vm286, %v282, 0.0
    %v289 = vperm.slane %v238, 1
    %v290 = vmul.f32 %v287, %v289
    %v291 = vmul.f32 %v288, %v289
    %294 = vrot.lane.b32.xlu0 %v290, 32
    %v295 = vpop.permute.xlu0 %294
    %296 = vrot.lane.b32.xlu0 %v291, 32
    %v297 = vpop.permute.xlu0 %296
    %v300 = vadd.f32 %v277, %v295
    %v301 = vadd.f32 %v278, %v297
    %v302 = vrot.slane %v251, 5
    %v303 = vrot.slane %v253, 5
    %vm304 = vcmp.lt.s32.totalorder %v240, 3
    %v305 = vsel %vm304, %v302, %v303
    %v306 = vsel %vm304, %v303, %v302
    %vm307 = vcmp.ge.s32.totalorder %v240, 3
    %v308 = vsel %vm307, 1, 0
    %vm309 = vcmp.eq.s32.totalorder %v308, 1
    %v310 = vsel %vm309, %v306, 0.0
    %v311 = vsel %vm309, %v305, 0.0
    %v312 = vperm.slane %v238, 0
    %v313 = vmul.f32 %v310, %v312
    %v314 = vmul.f32 %v311, %v312
    %317 = vrot.lane.b32.xlu0 %v313, 32
    %v318 = vpop.permute.xlu0 %317
    %319 = vrot.lane.b32.xlu0 %v314, 32
    %v320 = vpop.permute.xlu0 %319
    %v323 = vadd.f32 %v300, %v318
    %v324 = vadd.f32 %v301, %v320
    %v325 = vld [vmem:[%s3] sm:$0x1]
    %v327 = vperm.slane %v325, 0
    %328 = vrot.lane.b32.xlu0 %v327, 32
    %v329 = vpop.permute.xlu0 %328
    %v331 = vadd.f32 %v323, %v329
    %v332 = vadd.f32 %v324, %v329
    %v333 = vld [vmem:[#allocation15] sm:$0xff]
    %v334 = vld [vmem:[#allocation15 + $0x8] sm:$0xff]
    %v335 = vld [vmem:[#allocation15 + $0x10] sm:$0xff]
    %v336 = vld [vmem:[#allocation15 + $0x18] sm:$0xff]
    %v337 = vld [vmem:[%s5] sm:$0x1]
    %v339 = vperm.slane %v337, 0
    %343 = vrot.lane.b32.xlu0 %v331, 96
    %v344 = vpop.permute.xlu0 %343
    %345 = vrot.lane.b32.xlu0 %v332, 96
    %v346 = vpop.permute.xlu0 %345
    %v347 = vsel %vm126, %v344, 0
    %v349 = vsel %vm126, %v346, 0
    %351 = vmatpush.msra.mxu0 0.0
    %352 = vmatpush.msra.mxu0 0.0
    %353 = vmatpush.msra.mxu0 0.0
    %354 = vmatpush.msra.mxu0 0.0
    %355 = vmatpush.msra.mxu0 0.0
    %356 = vmatpush.msra.mxu0 0.0
    %357 = vmatpush.msra.mxu0 0.0
    %358 = vmatpush.msra.mxu0 0.0
    %359 = vmatpush.msra.mxu0 0.0
    %360 = vmatpush.msra.mxu0 0.0
    %361 = vmatpush.msra.mxu0 0.0
    %362 = vmatpush.msra.mxu0 0.0
    %363 = vmatpush.msra.mxu0 %v336
    %364 = vmatpush.msra.mxu0 %v335
    %365 = vmatpush.msra.mxu0 %v334
    %366 = vmatpush.msra.mxu0 %v333
    %367 = vmatmul.f32.gmra.mxu0 %v347
    %v368 = vpop.f32.mrf.mxu0
    %v369 = vadd.f32 %v339, %v368
    %370 = vmatmul.f32.gmra.mxu0 %v349
    %v371 = vpop.f32.mrf.mxu0
    %v372 = vadd.f32 %v339, %v371
    %373 = vdwg.mxu0
    %v374 = vsub.f32 0.0, %v369
    %v375 = vsub.f32 0.0, %v372
    %v376 = vmul.f32 %v374, 1.442695
    %v377 = vpow.pop %v376
    %v378 = vmul.f32 %v375, 1.442695
    %v379 = vpow.pop %v378
    %v380 = vadd.f32 %v377, 1.0
    %v381 = vadd.f32 %v379, 1.0
    %v382 = vrcp.pop %v380
    %v383 = vmul.f32 %v380, %v382
    %v384 = vsub.f32 1.0, %v383
    %v385 = vmul.f32 %v382, %v384
    %v386 = vadd.f32 %v382, %v385
    %vm387 = vweird.f32 %v380
    %vm388 = vweird.f32 %v382
    %vm389 = vmor %vm387, %vm388
    %v390 = vsel %vm389, %v382, %v386
    %v391 = vand.u32 2147483647, %v380
    %vm392 = vcmp.eq.f32.partialorder %v391, 8.507059e+37
    %v393 = vand.u32 %v380, 2147483648
    %v394 = vor.u32 1.1754944e-38, %v393
    %v395 = vsel %vm392, %v394, %v390
    %v396 = vmul.f32 1.0, %v395
    %v397 = vrcp.pop %v381
    %v398 = vmul.f32 %v381, %v397
    %v399 = vsub.f32 1.0, %v398
    %v400 = vmul.f32 %v397, %v399
    %v401 = vadd.f32 %v397, %v400
    %vm402 = vweird.f32 %v381
    %vm403 = vweird.f32 %v397
    %vm404 = vmor %vm402, %vm403
    %v405 = vsel %vm404, %v397, %v401
    %v406 = vand.u32 2147483647, %v381
    %vm407 = vcmp.eq.f32.partialorder %v406, 8.507059e+37
    %v408 = vand.u32 %v381, 2147483648
    %v409 = vor.u32 1.1754944e-38, %v408
    %v410 = vsel %vm407, %v409, %v405
    %v411 = vmul.f32 1.0, %v410
    %414 = vst.msk [vmem:[#allocation3] sm:$0xff] %vm126, %v344
    %415 = vst.msk [vmem:[#allocation3 + $0x8] sm:$0xff] %vm126, %v346
    %418 = vrot.lane.b32.xlu0 %v396, 112
    %v419 = vpop.permute.xlu0 %418
    %420 = vrot.lane.b32.xlu0 %v411, 112
    %v421 = vpop.permute.xlu0 %420
    %424 = vst.msk [vmem:[#allocation4] sm:$0xff] %vm126, %v419
    %425 = vst.msk [vmem:[#allocation4 + $0x8] sm:$0xff] %vm126, %v421
    %vm426 = vcmask 64512
    %427 = vst.msk [vmem:[#allocation5] sm:$0xff] %vm426, %v369
    %428 = vst.msk [vmem:[#allocation5 + $0x8] sm:$0xff] %vm426, %v372
    %431 = vrot.lane.b32.xlu0 %v369, 120
    %v432 = vpop.permute.xlu0 %431
    %433 = vrot.lane.b32.xlu0 %v372, 120
    %v434 = vpop.permute.xlu0 %433
    %437 = vst.msk [vmem:[#allocation6] sm:$0xff] %vm426, %v432
    %438 = vst.msk [vmem:[#allocation6 + $0x8] sm:$0xff] %vm426, %v434
    %v439 = vld [vmem:[#allocation17] sm:$0xff]
    %v440 = vmax.f32 %v439, 0.0
    %v441 = vand.u32 2147483647, %v439
    %v442 = vsub.f32 0.0, %v441
    %v443 = vmul.f32 %v442, 1.442695
    %v444 = vpow.pop %v443
    %v445 = vadd.f32 %v444, 1.0
    %v446 = vlog2.pop %v445
    %v447 = vmul.f32 %v446, 0.6931472
    %v448 = vadd.f32 %v440, %v447
    %v449 = vmul.f32 %v448, -8.0
    %450 = vst.msk [vmem:[#allocation8] sm:$0xff] %vm126, 0.0
    %451 = vst.msk [vmem:[#allocation8 + $0x8] sm:$0xff] %vm126, 0.0
    %v452 = vld [vmem:[#allocation4] sm:$0xff]
    %v453 = vld [vmem:[#allocation4 + $0x8] sm:$0xff]
    %v454 = vld [vmem:[#allocation3] sm:$0xff]
    %v455 = vld [vmem:[#allocation3 + $0x8] sm:$0xff]
    %v456 = vld [vmem:[#allocation5] sm:$0xff]
    %v457 = vld [vmem:[#allocation5 + $0x8] sm:$0xff]
    %v458 = vld [vmem:[#allocation6] sm:$0xff]
    %v459 = vld [vmem:[#allocation6 + $0x8] sm:$0xff]
    %v460 = vld [vmem:[#allocation8] sm:$0xff]
    %v461 = vld [vmem:[#allocation8 + $0x8] sm:$0xff]
    %v462 = vperm.slane %v452, 0
    %v463 = vperm.slane %v453, 0
    %v464 = vmul.f32 %v462, %v449
    %v465 = vmul.f32 %v463, %v449
    %v466 = vmul.f32 %v464, 1.442695
    %v467 = vpow.pop %v466
    %v468 = vmul.f32 %v465, 1.442695
    %v469 = vpow.pop %v468
    %v470 = vperm.slane %v456, 0
    %v471 = vlaneseq
    %v472 = vshrl.u32 %v471, 7
    %474 = vset.pattern.permute.xlu0 %v472
    %475 = vperm.xlu0 %474, %v470
    %v476 = vpop.permute.xlu0 %475
    %v477 = vperm.slane %v457, 0
    %v478 = vlaneseq
    %v479 = vshrl.u32 %v478, 7
    %481 = vset.pattern.permute.xlu0 %v479
    %482 = vperm.xlu0 %481, %v477
    %v483 = vpop.permute.xlu0 %482
    %v484 = vperm.slane %v454, 0
    %v485 = vperm.slane %v455, 0
    %v486 = vmul.f32 %v476, %v484
    %v487 = vmul.f32 %v483, %v485
    %v488 = vmul.f32 %v467, %v467
    %v489 = vmul.f32 %v469, %v469
    %v490 = vsub.f32 1.0, %v488
    %v491 = vsub.f32 1.0, %v489
    %v492 = vadd.f32 %v490, 1e-06
    %v493 = vadd.f32 %v491, 1e-06
    %v494 = vrsqrt.pop %v492
    %v495 = vmul.f32 %v494, %v492
    %v496 = vmul.f32 %v495, %v494
    %v497 = vmul.f32 0.5, %v496
    %v498 = vsub.f32 1.5, %v497
    %v499 = vmul.f32 %v494, %v498
    %v500 = vmul.f32 %v492, %v499
    %vm501 = vcmp.eq.f32.partialorder %v492, inf
    %v502 = vsel %vm501, %v492, %v500
    %vm503 = vcmp.eq.f32.partialorder %v492, 0.0
    %v504 = vand.u32 %v492, 2147483648
    %v505 = vsel %vm503, %v504, %v502
    %v506 = vrsqrt.pop %v493
    %v507 = vmul.f32 %v506, %v493
    %v508 = vmul.f32 %v507, %v506
    %v509 = vmul.f32 0.5, %v508
    %v510 = vsub.f32 1.5, %v509
    %v511 = vmul.f32 %v506, %v510
    %v512 = vmul.f32 %v493, %v511
    %vm513 = vcmp.eq.f32.partialorder %v493, inf
    %v514 = vsel %vm513, %v493, %v512
    %vm515 = vcmp.eq.f32.partialorder %v493, 0.0
    %v516 = vand.u32 %v493, 2147483648
    %v517 = vsel %vm515, %v516, %v514
    %v518 = vmul.f32 %v505, %v486
    %v519 = vmul.f32 %v517, %v487
    %v520 = vmul.f32 %v467, %v460
    %v521 = vmul.f32 %v469, %v461
    %v522 = vadd.f32 %v520, %v518
    %v523 = vadd.f32 %v521, %v519
    %v524 = vperm.slane %v458, 0
    %v525 = vlaneseq
    %v526 = vshrl.u32 %v525, 7
    %528 = vset.pattern.permute.xlu0 %v526
    %529 = vperm.xlu0 %528, %v524
    %v530 = vpop.permute.xlu0 %529
    %v531 = vperm.slane %v459, 0
    %v532 = vlaneseq
    %v533 = vshrl.u32 %v532, 7
    %535 = vset.pattern.permute.xlu0 %v533
    %536 = vperm.xlu0 %535, %v531
    %v537 = vpop.permute.xlu0 %536
    %v538 = vmul.f32 %v530, %v522
    %v539 = vmul.f32 %v537, %v523
    %v540 = vsel %vm126, %v538, 0.0
    %v541 = vrot.slane %v540, 4
    %v542 = vadd.f32 %v540, %v541
    %v543 = vrot.slane %v542, 2
    %v544 = vadd.f32 %v542, %v543
    %v545 = vrot.slane %v544, 1
    %v546 = vadd.f32 %v544, %v545
    %v547 = vsel %vm126, %v539, 0.0
    %v548 = vrot.slane %v547, 4
    %v549 = vadd.f32 %v547, %v548
    %v550 = vrot.slane %v549, 2
    %v551 = vadd.f32 %v549, %v550
    %v552 = vrot.slane %v551, 1
    %v553 = vadd.f32 %v551, %v552
    %v554 = vperm.slane %v452, 1
    %v555 = vperm.slane %v453, 1
    %v556 = vmul.f32 %v554, %v449
    %v557 = vmul.f32 %v555, %v449
    %v558 = vmul.f32 %v556, 1.442695
    %v559 = vpow.pop %v558
    %v560 = vmul.f32 %v557, 1.442695
    %v561 = vpow.pop %v560
    %v562 = vperm.slane %v456, 1
    %v563 = vlaneseq
    %v564 = vshrl.u32 %v563, 7
    %566 = vset.pattern.permute.xlu0 %v564
    %567 = vperm.xlu0 %566, %v562
    %v568 = vpop.permute.xlu0 %567
    %v569 = vperm.slane %v457, 1
    %v570 = vlaneseq
    %v571 = vshrl.u32 %v570, 7
    %573 = vset.pattern.permute.xlu0 %v571
    %574 = vperm.xlu0 %573, %v569
    %v575 = vpop.permute.xlu0 %574
    %v576 = vperm.slane %v454, 1
    %v577 = vperm.slane %v455, 1
    %v578 = vmul.f32 %v568, %v576
    %v579 = vmul.f32 %v575, %v577
    %v580 = vmul.f32 %v559, %v559
    %v581 = vmul.f32 %v561, %v561
    %v582 = vsub.f32 1.0, %v580
    %v583 = vsub.f32 1.0, %v581
    %v584 = vadd.f32 %v582, 1e-06
    %v585 = vadd.f32 %v583, 1e-06
    %v586 = vrsqrt.pop %v584
    %v587 = vmul.f32 %v586, %v584
    %v588 = vmul.f32 %v587, %v586
    %v589 = vmul.f32 0.5, %v588
    %v590 = vsub.f32 1.5, %v589
    %v591 = vmul.f32 %v586, %v590
    %v592 = vmul.f32 %v584, %v591
    %vm593 = vcmp.eq.f32.partialorder %v584, inf
    %v594 = vsel %vm593, %v584, %v592
    %vm595 = vcmp.eq.f32.partialorder %v584, 0.0
    %v596 = vand.u32 %v584, 2147483648
    %v597 = vsel %vm595, %v596, %v594
    %v598 = vrsqrt.pop %v585
    %v599 = vmul.f32 %v598, %v585
    %v600 = vmul.f32 %v599, %v598
    %v601 = vmul.f32 0.5, %v600
    %v602 = vsub.f32 1.5, %v601
    %v603 = vmul.f32 %v598, %v602
    %v604 = vmul.f32 %v585, %v603
    %vm605 = vcmp.eq.f32.partialorder %v585, inf
    %v606 = vsel %vm605, %v585, %v604
    %vm607 = vcmp.eq.f32.partialorder %v585, 0.0
    %v608 = vand.u32 %v585, 2147483648
    %v609 = vsel %vm607, %v608, %v606
    %v610 = vmul.f32 %v597, %v578
    %v611 = vmul.f32 %v609, %v579
    %v612 = vmul.f32 %v559, %v522
    %v613 = vmul.f32 %v561, %v523
    %v614 = vadd.f32 %v612, %v610
    %v615 = vadd.f32 %v613, %v611
    %v616 = vperm.slane %v458, 1
    %v617 = vlaneseq
    %v618 = vshrl.u32 %v617, 7
    %620 = vset.pattern.permute.xlu0 %v618
    %621 = vperm.xlu0 %620, %v616
    %v622 = vpop.permute.xlu0 %621
    %v623 = vperm.slane %v459, 1
    %v624 = vlaneseq
    %v625 = vshrl.u32 %v624, 7
    %627 = vset.pattern.permute.xlu0 %v625
    %628 = vperm.xlu0 %627, %v623
    %v629 = vpop.permute.xlu0 %628
    %v630 = vmul.f32 %v622, %v614
    %v631 = vmul.f32 %v629, %v615
    %v632 = vsel %vm126, %v630, 0.0
    %v633 = vrot.slane %v632, 4
    %v634 = vadd.f32 %v632, %v633
    %v635 = vrot.slane %v634, 2
    %v636 = vadd.f32 %v634, %v635
    %v637 = vrot.slane %v636, 1
    %v638 = vadd.f32 %v636, %v637
    %v639 = vsel %vm126, %v631, 0.0
    %v640 = vrot.slane %v639, 4
    %v641 = vadd.f32 %v639, %v640
    %v642 = vrot.slane %v641, 2
    %v643 = vadd.f32 %v641, %v642
    %v644 = vrot.slane %v643, 1
    %v645 = vadd.f32 %v643, %v644
    %v646 = vperm.slane %v452, 2
    %v647 = vperm.slane %v453, 2
    %v648 = vmul.f32 %v646, %v449
    %v649 = vmul.f32 %v647, %v449
    %v650 = vmul.f32 %v648, 1.442695
    %v651 = vpow.pop %v650
    %v652 = vmul.f32 %v649, 1.442695
    %v653 = vpow.pop %v652
    %v654 = vperm.slane %v456, 2
    %v655 = vlaneseq
    %v656 = vshrl.u32 %v655, 7
    %658 = vset.pattern.permute.xlu0 %v656
    %659 = vperm.xlu0 %658, %v654
    %v660 = vpop.permute.xlu0 %659
    %v661 = vperm.slane %v457, 2
    %v662 = vlaneseq
    %v663 = vshrl.u32 %v662, 7
    %665 = vset.pattern.permute.xlu0 %v663
    %666 = vperm.xlu0 %665, %v661
    %v667 = vpop.permute.xlu0 %666
    %v668 = vperm.slane %v454, 2
    %v669 = vperm.slane %v455, 2
    %v670 = vmul.f32 %v660, %v668
    %v671 = vmul.f32 %v667, %v669
    %v672 = vmul.f32 %v651, %v651
    %v673 = vmul.f32 %v653, %v653
    %v674 = vsub.f32 1.0, %v672
    %v675 = vsub.f32 1.0, %v673
    %v676 = vadd.f32 %v674, 1e-06
    %v677 = vadd.f32 %v675, 1e-06
    %v678 = vrsqrt.pop %v676
    %v679 = vmul.f32 %v678, %v676
    %v680 = vmul.f32 %v679, %v678
    %v681 = vmul.f32 0.5, %v680
    %v682 = vsub.f32 1.5, %v681
    %v683 = vmul.f32 %v678, %v682
    %v684 = vmul.f32 %v676, %v683
    %vm685 = vcmp.eq.f32.partialorder %v676, inf
    %v686 = vsel %vm685, %v676, %v684
    %vm687 = vcmp.eq.f32.partialorder %v676, 0.0
    %v688 = vand.u32 %v676, 2147483648
    %v689 = vsel %vm687, %v688, %v686
    %v690 = vrsqrt.pop %v677
    %v691 = vmul.f32 %v690, %v677
    %v692 = vmul.f32 %v691, %v690
    %v693 = vmul.f32 0.5, %v692
    %v694 = vsub.f32 1.5, %v693
    %v695 = vmul.f32 %v690, %v694
    %v696 = vmul.f32 %v677, %v695
    %vm697 = vcmp.eq.f32.partialorder %v677, inf
    %v698 = vsel %vm697, %v677, %v696
    %vm699 = vcmp.eq.f32.partialorder %v677, 0.0
    %v700 = vand.u32 %v677, 2147483648
    %v701 = vsel %vm699, %v700, %v698
    %v702 = vmul.f32 %v689, %v670
    %v703 = vmul.f32 %v701, %v671
    %v704 = vmul.f32 %v651, %v614
    %v705 = vmul.f32 %v653, %v615
    %v706 = vadd.f32 %v704, %v702
    %v707 = vadd.f32 %v705, %v703
    %v708 = vperm.slane %v458, 2
    %v709 = vlaneseq
    %v710 = vshrl.u32 %v709, 7
    %712 = vset.pattern.permute.xlu0 %v710
    %713 = vperm.xlu0 %712, %v708
    %v714 = vpop.permute.xlu0 %713
    %v715 = vperm.slane %v459, 2
    %v716 = vlaneseq
    %v717 = vshrl.u32 %v716, 7
    %719 = vset.pattern.permute.xlu0 %v717
    %720 = vperm.xlu0 %719, %v715
    %v721 = vpop.permute.xlu0 %720
    %v722 = vmul.f32 %v714, %v706
    %v723 = vmul.f32 %v721, %v707
    %v724 = vsel %vm126, %v722, 0.0
    %v725 = vrot.slane %v724, 4
    %v726 = vadd.f32 %v724, %v725
    %v727 = vrot.slane %v726, 2
    %v728 = vadd.f32 %v726, %v727
    %v729 = vrot.slane %v728, 1
    %v730 = vadd.f32 %v728, %v729
    %v731 = vsel %vm126, %v723, 0.0
    %v732 = vrot.slane %v731, 4
    %v733 = vadd.f32 %v731, %v732
    %v734 = vrot.slane %v733, 2
    %v735 = vadd.f32 %v733, %v734
    %v736 = vrot.slane %v735, 1
    %v737 = vadd.f32 %v735, %v736
    %v738 = vperm.slane %v452, 3
    %v739 = vperm.slane %v453, 3
    %v740 = vmul.f32 %v738, %v449
    %v741 = vmul.f32 %v739, %v449
    %v742 = vmul.f32 %v740, 1.442695
    %v743 = vpow.pop %v742
    %v744 = vmul.f32 %v741, 1.442695
    %v745 = vpow.pop %v744
    %v746 = vperm.slane %v456, 3
    %v747 = vlaneseq
    %v748 = vshrl.u32 %v747, 7
    %750 = vset.pattern.permute.xlu0 %v748
    %751 = vperm.xlu0 %750, %v746
    %v752 = vpop.permute.xlu0 %751
    %v753 = vperm.slane %v457, 3
    %v754 = vlaneseq
    %v755 = vshrl.u32 %v754, 7
    %757 = vset.pattern.permute.xlu0 %v755
    %758 = vperm.xlu0 %757, %v753
    %v759 = vpop.permute.xlu0 %758
    %v760 = vperm.slane %v454, 3
    %v761 = vperm.slane %v455, 3
    %v762 = vmul.f32 %v752, %v760
    %v763 = vmul.f32 %v759, %v761
    %v764 = vmul.f32 %v743, %v743
    %v765 = vmul.f32 %v745, %v745
    %v766 = vsub.f32 1.0, %v764
    %v767 = vsub.f32 1.0, %v765
    %v768 = vadd.f32 %v766, 1e-06
    %v769 = vadd.f32 %v767, 1e-06
    %v770 = vrsqrt.pop %v768
    %v771 = vmul.f32 %v770, %v768
    %v772 = vmul.f32 %v771, %v770
    %v773 = vmul.f32 0.5, %v772
    %v774 = vsub.f32 1.5, %v773
    %v775 = vmul.f32 %v770, %v774
    %v776 = vmul.f32 %v768, %v775
    %vm777 = vcmp.eq.f32.partialorder %v768, inf
    %v778 = vsel %vm777, %v768, %v776
    %vm779 = vcmp.eq.f32.partialorder %v768, 0.0
    %v780 = vand.u32 %v768, 2147483648
    %v781 = vsel %vm779, %v780, %v778
    %v782 = vrsqrt.pop %v769
    %v783 = vmul.f32 %v782, %v769
    %v784 = vmul.f32 %v783, %v782
    %v785 = vmul.f32 0.5, %v784
    %v786 = vsub.f32 1.5, %v785
    %v787 = vmul.f32 %v782, %v786
    %v788 = vmul.f32 %v769, %v787
    %vm789 = vcmp.eq.f32.partialorder %v769, inf
    %v790 = vsel %vm789, %v769, %v788
    %vm791 = vcmp.eq.f32.partialorder %v769, 0.0
    %v792 = vand.u32 %v769, 2147483648
    %v793 = vsel %vm791, %v792, %v790
    %v794 = vmul.f32 %v781, %v762
    %v795 = vmul.f32 %v793, %v763
    %v796 = vmul.f32 %v743, %v706
    %v797 = vmul.f32 %v745, %v707
    %v798 = vadd.f32 %v796, %v794
    %v799 = vadd.f32 %v797, %v795
    %v800 = vperm.slane %v458, 3
    %v801 = vlaneseq
    %v802 = vshrl.u32 %v801, 7
    %804 = vset.pattern.permute.xlu0 %v802
    %805 = vperm.xlu0 %804, %v800
    %v806 = vpop.permute.xlu0 %805
    %v807 = vperm.slane %v459, 3
    %v808 = vlaneseq
    %v809 = vshrl.u32 %v808, 7
    %811 = vset.pattern.permute.xlu0 %v809
    %812 = vperm.xlu0 %811, %v807
    %v813 = vpop.permute.xlu0 %812
    %v814 = vmul.f32 %v806, %v798
    %v815 = vmul.f32 %v813, %v799
    %v816 = vsel %vm126, %v814, 0.0
    %v817 = vrot.slane %v816, 4
    %v818 = vadd.f32 %v816, %v817
    %v819 = vrot.slane %v818, 2
    %v820 = vadd.f32 %v818, %v819
    %v821 = vrot.slane %v820, 1
    %v822 = vadd.f32 %v820, %v821
    %v823 = vsel %vm126, %v815, 0.0
    %v824 = vrot.slane %v823, 4
    %v825 = vadd.f32 %v823, %v824
    %v826 = vrot.slane %v825, 2
    %v827 = vadd.f32 %v825, %v826
    %v828 = vrot.slane %v827, 1
    %v829 = vadd.f32 %v827, %v828
    %v830 = vperm.slane %v452, 4
    %v831 = vperm.slane %v453, 4
    %v832 = vmul.f32 %v830, %v449
    %v833 = vmul.f32 %v831, %v449
    %v834 = vmul.f32 %v832, 1.442695
    %v835 = vpow.pop %v834
    %v836 = vmul.f32 %v833, 1.442695
    %v837 = vpow.pop %v836
    %v838 = vperm.slane %v456, 4
    %v839 = vlaneseq
    %v840 = vshrl.u32 %v839, 7
    %842 = vset.pattern.permute.xlu0 %v840
    %843 = vperm.xlu0 %842, %v838
    %v844 = vpop.permute.xlu0 %843
    %v845 = vperm.slane %v457, 4
    %v846 = vlaneseq
    %v847 = vshrl.u32 %v846, 7
    %849 = vset.pattern.permute.xlu0 %v847
    %850 = vperm.xlu0 %849, %v845
    %v851 = vpop.permute.xlu0 %850
    %v852 = vperm.slane %v454, 4
    %v853 = vperm.slane %v455, 4
    %v854 = vmul.f32 %v844, %v852
    %v855 = vmul.f32 %v851, %v853
    %v856 = vmul.f32 %v835, %v835
    %v857 = vmul.f32 %v837, %v837
    %v858 = vsub.f32 1.0, %v856
    %v859 = vsub.f32 1.0, %v857
    %v860 = vadd.f32 %v858, 1e-06
    %v861 = vadd.f32 %v859, 1e-06
    %v862 = vrsqrt.pop %v860
    %v863 = vmul.f32 %v862, %v860
    %v864 = vmul.f32 %v863, %v862
    %v865 = vmul.f32 0.5, %v864
    %v866 = vsub.f32 1.5, %v865
    %v867 = vmul.f32 %v862, %v866
    %v868 = vmul.f32 %v860, %v867
    %vm869 = vcmp.eq.f32.partialorder %v860, inf
    %v870 = vsel %vm869, %v860, %v868
    %vm871 = vcmp.eq.f32.partialorder %v860, 0.0
    %v872 = vand.u32 %v860, 2147483648
    %v873 = vsel %vm871, %v872, %v870
    %v874 = vrsqrt.pop %v861
    %v875 = vmul.f32 %v874, %v861
    %v876 = vmul.f32 %v875, %v874
    %v877 = vmul.f32 0.5, %v876
    %v878 = vsub.f32 1.5, %v877
    %v879 = vmul.f32 %v874, %v878
    %v880 = vmul.f32 %v861, %v879
    %vm881 = vcmp.eq.f32.partialorder %v861, inf
    %v882 = vsel %vm881, %v861, %v880
    %vm883 = vcmp.eq.f32.partialorder %v861, 0.0
    %v884 = vand.u32 %v861, 2147483648
    %v885 = vsel %vm883, %v884, %v882
    %v886 = vmul.f32 %v873, %v854
    %v887 = vmul.f32 %v885, %v855
    %v888 = vmul.f32 %v835, %v798
    %v889 = vmul.f32 %v837, %v799
    %v890 = vadd.f32 %v888, %v886
    %v891 = vadd.f32 %v889, %v887
    %v892 = vperm.slane %v458, 4
    %v893 = vlaneseq
    %v894 = vshrl.u32 %v893, 7
    %896 = vset.pattern.permute.xlu0 %v894
    %897 = vperm.xlu0 %896, %v892
    %v898 = vpop.permute.xlu0 %897
    %v899 = vperm.slane %v459, 4
    %v900 = vlaneseq
    %v901 = vshrl.u32 %v900, 7
    %903 = vset.pattern.permute.xlu0 %v901
    %904 = vperm.xlu0 %903, %v899
    %v905 = vpop.permute.xlu0 %904
    %v906 = vmul.f32 %v898, %v890
    %v907 = vmul.f32 %v905, %v891
    %v908 = vsel %vm126, %v906, 0.0
    %v909 = vrot.slane %v908, 4
    %v910 = vadd.f32 %v908, %v909
    %v911 = vrot.slane %v910, 2
    %v912 = vadd.f32 %v910, %v911
    %v913 = vrot.slane %v912, 1
    %v914 = vadd.f32 %v912, %v913
    %v915 = vsel %vm126, %v907, 0.0
    %v916 = vrot.slane %v915, 4
    %v917 = vadd.f32 %v915, %v916
    %v918 = vrot.slane %v917, 2
    %v919 = vadd.f32 %v917, %v918
    %v920 = vrot.slane %v919, 1
    %v921 = vadd.f32 %v919, %v920
    %v922 = vperm.slane %v452, 5
    %v923 = vperm.slane %v453, 5
    %v924 = vmul.f32 %v922, %v449
    %v925 = vmul.f32 %v923, %v449
    %v926 = vmul.f32 %v924, 1.442695
    %v927 = vpow.pop %v926
    %v928 = vmul.f32 %v925, 1.442695
    %v929 = vpow.pop %v928
    %v930 = vperm.slane %v456, 5
    %v931 = vlaneseq
    %v932 = vshrl.u32 %v931, 7
    %934 = vset.pattern.permute.xlu0 %v932
    %935 = vperm.xlu0 %934, %v930
    %v936 = vpop.permute.xlu0 %935
    %v937 = vperm.slane %v457, 5
    %v938 = vlaneseq
    %v939 = vshrl.u32 %v938, 7
    %941 = vset.pattern.permute.xlu0 %v939
    %942 = vperm.xlu0 %941, %v937
    %v943 = vpop.permute.xlu0 %942
    %v944 = vperm.slane %v454, 5
    %v945 = vperm.slane %v455, 5
    %v946 = vmul.f32 %v936, %v944
    %v947 = vmul.f32 %v943, %v945
    %v948 = vmul.f32 %v927, %v927
    %v949 = vmul.f32 %v929, %v929
    %v950 = vsub.f32 1.0, %v948
    %v951 = vsub.f32 1.0, %v949
    %v952 = vadd.f32 %v950, 1e-06
    %v953 = vadd.f32 %v951, 1e-06
    %v954 = vrsqrt.pop %v952
    %v955 = vmul.f32 %v954, %v952
    %v956 = vmul.f32 %v955, %v954
    %v957 = vmul.f32 0.5, %v956
    %v958 = vsub.f32 1.5, %v957
    %v959 = vmul.f32 %v954, %v958
    %v960 = vmul.f32 %v952, %v959
    %vm961 = vcmp.eq.f32.partialorder %v952, inf
    %v962 = vsel %vm961, %v952, %v960
    %vm963 = vcmp.eq.f32.partialorder %v952, 0.0
    %v964 = vand.u32 %v952, 2147483648
    %v965 = vsel %vm963, %v964, %v962
    %v966 = vrsqrt.pop %v953
    %v967 = vmul.f32 %v966, %v953
    %v968 = vmul.f32 %v967, %v966
    %v969 = vmul.f32 0.5, %v968
    %v970 = vsub.f32 1.5, %v969
    %v971 = vmul.f32 %v966, %v970
    %v972 = vmul.f32 %v953, %v971
    %vm973 = vcmp.eq.f32.partialorder %v953, inf
    %v974 = vsel %vm973, %v953, %v972
    %vm975 = vcmp.eq.f32.partialorder %v953, 0.0
    %v976 = vand.u32 %v953, 2147483648
    %v977 = vsel %vm975, %v976, %v974
    %v978 = vmul.f32 %v965, %v946
    %v979 = vmul.f32 %v977, %v947
    %v980 = vmul.f32 %v927, %v890
    %v981 = vmul.f32 %v929, %v891
    %v982 = vadd.f32 %v980, %v978
    %v983 = vadd.f32 %v981, %v979
    %v984 = vperm.slane %v458, 5
    %v985 = vlaneseq
    %v986 = vshrl.u32 %v985, 7
    %988 = vset.pattern.permute.xlu0 %v986
    %989 = vperm.xlu0 %988, %v984
    %v990 = vpop.permute.xlu0 %989
    %v991 = vperm.slane %v459, 5
    %v992 = vlaneseq
    %v993 = vshrl.u32 %v992, 7
    %995 = vset.pattern.permute.xlu0 %v993
    %996 = vperm.xlu0 %995, %v991
    %v997 = vpop.permute.xlu0 %996
    %v998 = vmul.f32 %v990, %v982
    %v999 = vmul.f32 %v997, %v983
    %v1000 = vsel %vm126, %v998, 0.0
    %v1001 = vrot.slane %v1000, 4
    %v1002 = vadd.f32 %v1000, %v1001
    %v1003 = vrot.slane %v1002, 2
    %v1004 = vadd.f32 %v1002, %v1003
    %v1005 = vrot.slane %v1004, 1
    %v1006 = vadd.f32 %v1004, %v1005
    %v1007 = vsel %vm126, %v999, 0.0
    %v1008 = vrot.slane %v1007, 4
    %v1009 = vadd.f32 %v1007, %v1008
    %v1010 = vrot.slane %v1009, 2
    %v1011 = vadd.f32 %v1009, %v1010
    %v1012 = vrot.slane %v1011, 1
    %v1013 = vadd.f32 %v1011, %v1012
    %v1014 = vperm.slane %v452, 6
    %v1015 = vperm.slane %v453, 6
    %v1016 = vmul.f32 %v1014, %v449
    %v1017 = vmul.f32 %v1015, %v449
    %v1018 = vmul.f32 %v1016, 1.442695
    %v1019 = vpow.pop %v1018
    %v1020 = vmul.f32 %v1017, 1.442695
    %v1021 = vpow.pop %v1020
    %v1022 = vperm.slane %v456, 6
    %v1023 = vlaneseq
    %v1024 = vshrl.u32 %v1023, 7
    %1026 = vset.pattern.permute.xlu0 %v1024
    %1027 = vperm.xlu0 %1026, %v1022
    %v1028 = vpop.permute.xlu0 %1027
    %v1029 = vperm.slane %v457, 6
    %v1030 = vlaneseq
    %v1031 = vshrl.u32 %v1030, 7
    %1033 = vset.pattern.permute.xlu0 %v1031
    %1034 = vperm.xlu0 %1033, %v1029
    %v1035 = vpop.permute.xlu0 %1034
    %v1036 = vperm.slane %v454, 6
    %v1037 = vperm.slane %v455, 6
    %v1038 = vmul.f32 %v1028, %v1036
    %v1039 = vmul.f32 %v1035, %v1037
    %v1040 = vmul.f32 %v1019, %v1019
    %v1041 = vmul.f32 %v1021, %v1021
    %v1042 = vsub.f32 1.0, %v1040
    %v1043 = vsub.f32 1.0, %v1041
    %v1044 = vadd.f32 %v1042, 1e-06
    %v1045 = vadd.f32 %v1043, 1e-06
    %v1046 = vrsqrt.pop %v1044
    %v1047 = vmul.f32 %v1046, %v1044
    %v1048 = vmul.f32 %v1047, %v1046
    %v1049 = vmul.f32 0.5, %v1048
    %v1050 = vsub.f32 1.5, %v1049
    %v1051 = vmul.f32 %v1046, %v1050
    %v1052 = vmul.f32 %v1044, %v1051
    %vm1053 = vcmp.eq.f32.partialorder %v1044, inf
    %v1054 = vsel %vm1053, %v1044, %v1052
    %vm1055 = vcmp.eq.f32.partialorder %v1044, 0.0
    %v1056 = vand.u32 %v1044, 2147483648
    %v1057 = vsel %vm1055, %v1056, %v1054
    %v1058 = vrsqrt.pop %v1045
    %v1059 = vmul.f32 %v1058, %v1045
    %v1060 = vmul.f32 %v1059, %v1058
    %v1061 = vmul.f32 0.5, %v1060
    %v1062 = vsub.f32 1.5, %v1061
    %v1063 = vmul.f32 %v1058, %v1062
    %v1064 = vmul.f32 %v1045, %v1063
    %vm1065 = vcmp.eq.f32.partialorder %v1045, inf
    %v1066 = vsel %vm1065, %v1045, %v1064
    %vm1067 = vcmp.eq.f32.partialorder %v1045, 0.0
    %v1068 = vand.u32 %v1045, 2147483648
    %v1069 = vsel %vm1067, %v1068, %v1066
    %v1070 = vmul.f32 %v1057, %v1038
    %v1071 = vmul.f32 %v1069, %v1039
    %v1072 = vmul.f32 %v1019, %v982
    %v1073 = vmul.f32 %v1021, %v983
    %v1074 = vadd.f32 %v1072, %v1070
    %v1075 = vadd.f32 %v1073, %v1071
    %v1076 = vperm.slane %v458, 6
    %v1077 = vlaneseq
    %v1078 = vshrl.u32 %v1077, 7
    %1080 = vset.pattern.permute.xlu0 %v1078
    %1081 = vperm.xlu0 %1080, %v1076
    %v1082 = vpop.permute.xlu0 %1081
    %v1083 = vperm.slane %v459, 6
    %v1084 = vlaneseq
    %v1085 = vshrl.u32 %v1084, 7
    %1087 = vset.pattern.permute.xlu0 %v1085
    %1088 = vperm.xlu0 %1087, %v1083
    %v1089 = vpop.permute.xlu0 %1088
    %v1090 = vmul.f32 %v1082, %v1074
    %v1091 = vmul.f32 %v1089, %v1075
    %v1092 = vsel %vm126, %v1090, 0.0
    %v1093 = vrot.slane %v1092, 4
    %v1094 = vadd.f32 %v1092, %v1093
    %v1095 = vrot.slane %v1094, 2
    %v1096 = vadd.f32 %v1094, %v1095
    %v1097 = vrot.slane %v1096, 1
    %v1098 = vadd.f32 %v1096, %v1097
    %v1099 = vsel %vm126, %v1091, 0.0
    %v1100 = vrot.slane %v1099, 4
    %v1101 = vadd.f32 %v1099, %v1100
    %v1102 = vrot.slane %v1101, 2
    %v1103 = vadd.f32 %v1101, %v1102
    %v1104 = vrot.slane %v1103, 1
    %v1105 = vadd.f32 %v1103, %v1104
    %v1106 = vperm.slane %v452, 7
    %v1107 = vperm.slane %v453, 7
    %v1108 = vmul.f32 %v1106, %v449
    %v1109 = vmul.f32 %v1107, %v449
    %v1110 = vmul.f32 %v1108, 1.442695
    %v1111 = vpow.pop %v1110
    %v1112 = vmul.f32 %v1109, 1.442695
    %v1113 = vpow.pop %v1112
    %v1114 = vperm.slane %v456, 7
    %v1115 = vlaneseq
    %v1116 = vshrl.u32 %v1115, 7
    %1118 = vset.pattern.permute.xlu0 %v1116
    %1119 = vperm.xlu0 %1118, %v1114
    %v1120 = vpop.permute.xlu0 %1119
    %v1121 = vperm.slane %v457, 7
    %v1122 = vlaneseq
    %v1123 = vshrl.u32 %v1122, 7
    %1125 = vset.pattern.permute.xlu0 %v1123
    %1126 = vperm.xlu0 %1125, %v1121
    %v1127 = vpop.permute.xlu0 %1126
    %v1128 = vperm.slane %v454, 7
    %v1129 = vperm.slane %v455, 7
    %v1130 = vmul.f32 %v1120, %v1128
    %v1131 = vmul.f32 %v1127, %v1129
    %v1132 = vmul.f32 %v1111, %v1111
    %v1133 = vmul.f32 %v1113, %v1113
    %v1134 = vsub.f32 1.0, %v1132
    %v1135 = vsub.f32 1.0, %v1133
    %v1136 = vadd.f32 %v1134, 1e-06
    %v1137 = vadd.f32 %v1135, 1e-06
    %v1138 = vrsqrt.pop %v1136
    %v1139 = vmul.f32 %v1138, %v1136
    %v1140 = vmul.f32 %v1139, %v1138
    %v1141 = vmul.f32 0.5, %v1140
    %v1142 = vsub.f32 1.5, %v1141
    %v1143 = vmul.f32 %v1138, %v1142
    %v1144 = vmul.f32 %v1136, %v1143
    %vm1145 = vcmp.eq.f32.partialorder %v1136, inf
    %v1146 = vsel %vm1145, %v1136, %v1144
    %vm1147 = vcmp.eq.f32.partialorder %v1136, 0.0
    %v1148 = vand.u32 %v1136, 2147483648
    %v1149 = vsel %vm1147, %v1148, %v1146
    %v1150 = vrsqrt.pop %v1137
    %v1151 = vmul.f32 %v1150, %v1137
    %v1152 = vmul.f32 %v1151, %v1150
    %v1153 = vmul.f32 0.5, %v1152
    %v1154 = vsub.f32 1.5, %v1153
    %v1155 = vmul.f32 %v1150, %v1154
    %v1156 = vmul.f32 %v1137, %v1155
    %vm1157 = vcmp.eq.f32.partialorder %v1137, inf
    %v1158 = vsel %vm1157, %v1137, %v1156
    %vm1159 = vcmp.eq.f32.partialorder %v1137, 0.0
    %v1160 = vand.u32 %v1137, 2147483648
    %v1161 = vsel %vm1159, %v1160, %v1158
    %v1162 = vmul.f32 %v1149, %v1130
    %v1163 = vmul.f32 %v1161, %v1131
    %v1164 = vmul.f32 %v1111, %v1074
    %v1165 = vmul.f32 %v1113, %v1075
    %v1166 = vadd.f32 %v1164, %v1162
    %v1167 = vadd.f32 %v1165, %v1163
    %v1168 = vperm.slane %v458, 7
    %v1169 = vlaneseq
    %v1170 = vshrl.u32 %v1169, 7
    %1172 = vset.pattern.permute.xlu0 %v1170
    %1173 = vperm.xlu0 %1172, %v1168
    %v1174 = vpop.permute.xlu0 %1173
    %v1175 = vperm.slane %v459, 7
    %v1176 = vlaneseq
    %v1177 = vshrl.u32 %v1176, 7
    %1179 = vset.pattern.permute.xlu0 %v1177
    %1180 = vperm.xlu0 %1179, %v1175
    %v1181 = vpop.permute.xlu0 %1180
    %v1182 = vmul.f32 %v1174, %v1166
    %v1183 = vmul.f32 %v1181, %v1167
    %v1184 = vsel %vm126, %v1182, 0.0
    %v1185 = vrot.slane %v1184, 4
    %v1186 = vadd.f32 %v1184, %v1185
    %v1187 = vrot.slane %v1186, 2
    %v1188 = vadd.f32 %v1186, %v1187
    %v1189 = vrot.slane %v1188, 1
    %v1190 = vadd.f32 %v1188, %v1189
    %v1191 = vsel %vm126, %v1183, 0.0
    %v1192 = vrot.slane %v1191, 4
    %v1193 = vadd.f32 %v1191, %v1192
    %v1194 = vrot.slane %v1193, 2
    %v1195 = vadd.f32 %v1193, %v1194
    %v1196 = vrot.slane %v1195, 1
    %v1197 = vadd.f32 %v1195, %v1196
    %1198 = vst.msk [vmem:[#allocation8] sm:$0xff] %vm126, %v1166
    %1199 = vst.msk [vmem:[#allocation8 + $0x8] sm:$0xff] %vm126, %v1167
    %vm1200 = vcmask 1040384
    %v1201 = vsel %vm1200, %v546, %v638
    %v1202 = vsel %vm1200, %v553, %v645
    %vm1203 = vcmask 1041408
    %v1204 = vsel %vm1203, %v1201, %v730
    %v1205 = vsel %vm1203, %v1202, %v737
    %vm1206 = vcmask 1042432
    %v1207 = vsel %vm1206, %v1204, %v822
    %v1208 = vsel %vm1206, %v1205, %v829
    %vm1209 = vcmask 1043456
    %v1210 = vsel %vm1209, %v1207, %v914
    %v1211 = vsel %vm1209, %v1208, %v921
    %vm1212 = vcmask 1044480
    %v1213 = vsel %vm1212, %v1210, %v1006
    %v1214 = vsel %vm1212, %v1211, %v1013
    %vm1215 = vcmask 1045504
    %v1216 = vsel %vm1215, %v1213, %v1098
    %v1217 = vsel %vm1215, %v1214, %v1105
    %vm1218 = vcmask 1046528
    %v1219 = vsel %vm1218, %v1216, %v1190
    %v1220 = vsel %vm1218, %v1217, %v1197
    %1221 = vst.msk [vmem:[#allocation7] sm:$0xff] %vm126, %v1219
    %1222 = vst.msk [vmem:[#allocation7 + $0x8] sm:$0xff] %vm126, %v1220
    %v1223 = vld [vmem:[#allocation2] sm:$0xff]
    %v1224 = vld [vmem:[#allocation2 + $0x8] sm:$0xff]
    %v1225 = vld [vmem:[#allocation7] sm:$0xff]
    %v1226 = vld [vmem:[#allocation7 + $0x8] sm:$0xff]
    %v1227 = vmul.f32 %v1223, %v1225
    %v1228 = vmul.f32 %v1224, %v1226
    %v1229 = vld [vmem:[#allocation18] sm:$0xff]
    %v1230 = vld [vmem:[#allocation18 + $0x8] sm:$0xff]
    %v1231 = vld [vmem:[#allocation18 + $0x10] sm:$0xff]
    %v1232 = vld [vmem:[#allocation18 + $0x18] sm:$0xff]
    %v1234 = vsel %vm126, %v1227, 0
    %v1237 = vsel %vm126, %v1228, 0
    %1239 = vmatpush.msra.mxu0 0.0
    %1240 = vmatpush.msra.mxu0 0.0
    %1241 = vmatpush.msra.mxu0 0.0
    %1242 = vmatpush.msra.mxu0 0.0
    %1243 = vmatpush.msra.mxu0 0.0
    %1244 = vmatpush.msra.mxu0 0.0
    %1245 = vmatpush.msra.mxu0 0.0
    %1246 = vmatpush.msra.mxu0 0.0
    %1247 = vmatpush.msra.mxu0 0.0
    %1248 = vmatpush.msra.mxu0 0.0
    %1249 = vmatpush.msra.mxu0 0.0
    %1250 = vmatpush.msra.mxu0 0.0
    %1251 = vmatpush.msra.mxu0 %v1232
    %1252 = vmatpush.msra.mxu0 %v1231
    %1253 = vmatpush.msra.mxu0 %v1230
    %1254 = vmatpush.msra.mxu0 %v1229
    %1255 = vmatmul.f32.gmra.mxu0 %v1234
    %v1256 = vpop.f32.mrf.mxu0
    %v1257 = vadd.f32 0.0, %v1256
    %1258 = vmatmul.f32.gmra.mxu0 %v1237
    %v1259 = vpop.f32.mrf.mxu0
    %v1260 = vadd.f32 0.0, %v1259
    %1261 = vdwg.mxu0
    %1262 = vst.msk [vmem:[#allocation20] sm:$0xff] %vm126, %v1257
    %1263 = vst.msk [vmem:[#allocation20 + $0x8] sm:$0xff] %vm126, %v1260
    // Predicated region
    $region58: #{tpu_custom_call.1} parent=1 // pred_check
      _
    $region59: #{tpu_custom_call.1} parent=1 // pred_check_branch
      %1265 = sbr.rel (0) target = $region61
    $region60: #{tpu_custom_call.1} parent=1 // pred_region
      %1267 = vsyncadd [#allocation11], 0
      %s1268 = sshll.u32 [#allocation20], 4
      %s1269 = int_to_ptr.vmem [resolvable:$true] %s1268
      %s1270 = sshll.u32 %s8, 4
      %s1271 = int_to_ptr.hbm [resolvable:$true] %s1270
      %1276 = dma.vmem_to_hbm [thread:$0]  %s1269, 256, %s1271, [#allocation11], 128, 128, 8
    $region61: #{tpu_custom_call.1} parent=1 // pred_fallthru
      _
    // Predicated region
    $region62: #{tpu_custom_call.1} parent=1 // pred_check
      _
    $region63: #{tpu_custom_call.1} parent=1 // pred_check_branch
      %1278 = sbr.rel (0) target = $region65
    $region64: #{tpu_custom_call.1} parent=1 // pred_region
      %1280 = dma.done [#allocation11], 256
    $region65: #{tpu_custom_call.1} parent=1 // pred_fallthru
      _
    %1281 = vsyncpa [#allocation10], 1
    %1282 = vsyncpa [#allocation13], 1
    %1283 = vsyncpa [#allocation16], 1
    %1284 = vsyncpa [#allocation19], 1
    %1285 = vsyncpa [#allocation11], 1

</llo_original>
